<compile_context>
chip_gen: v7x
topology: tpu7x:2x2x1
jax: 0.10.0
libtpu: 0.0.40
codegen_flags: <defaults>
</compile_context>

<pallas_src>
import functools
import inspect
import math

import jax
import jax.numpy as jnp
from jax.experimental import pallas as pl
from jax.experimental.pallas import tpu as pltpu


def _blockspec_supports_pipeline_mode():
    if not hasattr(pl, "Buffered"):
        return False
    try:
        return "pipeline_mode" in inspect.signature(pl.BlockSpec).parameters
    except (TypeError, ValueError):
        return True


_HAS_PIPELINE_MODE = _blockspec_supports_pipeline_mode()


@functools.lru_cache(maxsize=1)
def _vmem_capacity_bytes():
    """Physical VMEM per TensorCore (v5e/v6e: 128 MiB, v7x: 64 MiB)."""
    try:
        cap = int(getattr(pltpu.get_tpu_info(), "vmem_capacity_bytes", 0))
        if cap > 0:
            return cap
    except Exception:
        pass
    try:
        kind = jax.devices()[0].device_kind.lower()
        if "v7" in kind or "7x" in kind:
            return 64 << 20
    except Exception:
        pass
    return 128 << 20


def _generation_budgets():
    """(row_budget, vmem_clamp_bytes), sized per TPU generation."""
    cap = _vmem_capacity_bytes()
    if cap <= (64 << 20):
        # v7x: never request the entire physical VMEM; leave headroom for
        # Mosaic internal scratch / spill buffers.
        return 512, int(cap * 3 // 4)                      # ~48 MiB
    # 128-MiB parts (v5e/v6e): bigger row tiles amortize per-step overhead.
    return 1024, min(int(cap * 25 // 32), 100 << 20)       # ~100 MiB


def _pick_block_b(B, T, row_budget):
    """Largest divisor of B that (a) keeps >=4 grid steps where possible so
    v7x's two TensorCores both take "parallel" work and the pipeline has
    iterations to overlap, and (b) respects the per-generation row budget."""
    min_steps = min(B, 4)
    cap = max(1, min(B // min_steps, max(1, row_budget // max(T, 1))))
    for cand in range(min(cap, B), 0, -1):
        if B % cand == 0:
            return cand
    return 1


def _score_group(Bt, T):
    """Batch elements packed per score tile so its last dim approaches a full
    128-lane vreg (lane-dense softmax reductions / stores).  For T >= 128 the
    per-batch (T, T) tile is already lane-dense, so no packing."""
    if T >= 128:
        return 1
    target = max(1, 128 // T)
    for cand in range(min(Bt, target), 0, -1):
        if Bt % cand == 0:
            return cand
    return 1


def _mlstm_kernel(
    x_ref,          # (Bt, T, D)   input block, compute dtype
    w_qkvfi_ref,    # (D, 5D)      fused q/k/v/f/i weights (1/sqrt(D) folded in q)
    b_qkvfi_ref,    # (1, 5D)      fused biases, f32 (f_bias folded into b_f)
    wo_ref,         # (D, D)       output projection weights
    bo_ref,         # (1, D)       output projection bias, f32
    out_ref,        # (Bt, T, D)
):
    Bt, T, D = x_ref.shape
    rows = Bt * T
    cdt = x_ref.dtype                 # MXU compute dtype (f32 or bf16)

    x2 = x_ref[...].reshape(rows, D)  # flatten batch tile -> more MXU rows

    # Fused projection: one (rows, D) @ (D, 5D) matmul, f32 accumulation.
    # NOTE: a D=128 contraction fills only half of the 256-wide v6e/v7x MXU
    # (it is native on v5e's 128x128); large row tiles keep the M dim full.
    # TODO(synk): for very large D (>= ~2048 f32 on v7x) add a contraction
    # grid axis so the fused (D, 5D) weight streams in (Dk, 5D) tiles into an
    # f32 accumulator instead of residing whole in VMEM.
    proj = (
        jnp.dot(x2, w_qkvfi_ref[...], preferred_element_type=jnp.float32)
        + b_qkvfi_ref[...]
    )                                               # (rows, 5D) f32
    q = proj[:, 0 * D:1 * D].astype(cdt)            # 1/sqrt(D) already folded in
    k = proj[:, 1 * D:2 * D].astype(cdt)
    v_f32 = proj[:, 2 * D:3 * D]

    # Gate nonlinearities right after the projection: the EUP sigmoid / exp
    # co-issue under the MXU-heavy attention matmuls below, and the gate
    # pre-activations retire early (smaller live-f32 / spill footprint).
    f = jax.nn.sigmoid(proj[:, 3 * D:4 * D])        # f_bias already folded in
    i = jnp.exp(proj[:, 4 * D:5 * D])               # unstabilized (matches torch)

    # Attention.  Batch elements are packed g-per-score-tile with a
    # block-diagonal mask so the (g*T, g*T) score matrix is lane-dense for
    # short sequences; the masked softmax equals the per-batch softmax exactly.
    # TODO(synk): for long sequences (T >> 128), tile this flash-style over a
    # KV grid axis ("arbitrary") with running max/sum/acc scratch instead of
    # materializing (T, T) scores in VMEM.
    g = _score_group(Bt, T)
    ng = Bt // g
    gt = g * T
    qg = q.reshape(ng, gt, D)
    kg = k.reshape(ng, gt, D)
    vg = v_f32.astype(cdt).reshape(ng, gt, D)
    scores = jnp.einsum("bqd,bkd->bqk", qg, kg,
                        preferred_element_type=jnp.float32)    # (ng, gt, gt)
    if g > 1:
        rid = jax.lax.broadcasted_iota(jnp.int32, (gt, gt), 0) // T
        cid = jax.lax.broadcasted_iota(jnp.int32, (gt, gt), 1) // T
        scores = jnp.where((rid == cid)[None, :, :], scores, -1e30)
    scores = scores - jnp.max(scores, axis=-1, keepdims=True)
    p = jnp.exp(scores)
    attn = p * pl.reciprocal(jnp.sum(p, axis=-1, keepdims=True), approx=True)
    mem = jnp.einsum("bqk,bkd->bqd", attn.astype(cdt), vg,
                     preferred_element_type=jnp.float32).reshape(rows, D)

    # mLSTM gating in f32.  Exact division for the normalizer; the approx EUP
    # reciprocal is reserved for the softmax denominator above.
    mem = (f * mem + i * v_f32) / (f + i)

    # Output projection (dropout = identity at inference).
    out = (
        jnp.dot(mem.astype(cdt), wo_ref[...], preferred_element_type=jnp.float32)
        + bo_ref[...]
    )
    out_ref[...] = out.reshape(Bt, T, D).astype(out_ref.dtype)


@functools.partial(jax.jit, static_argnames=("single_buffer_weights",))
def mlstm_forward(x, params, *, single_buffer_weights=True):
    """x: (B, T, D).  params: weights stored (D_in, D_out), biases (1, D)."""
    B, T, D = x.shape
    dtype = x.dtype
    row_budget, vmem_clamp = _generation_budgets()
    block_b = _pick_block_b(B, T, row_budget)

    # Fold the attention scale into W_q / b_q and f_bias into b_f, then fuse
    # the five projections into a single (D, 5D) weight / (1, 5D) bias.
    # (For bf16 inputs the scale is folded before the cast; the perturbation
    # vs. post-matmul f32 scaling is far below test tolerance.)
    scale = 1.0 / math.sqrt(D)
    w_fused = jnp.concatenate(
        [params["wq"] * scale, params["wk"], params["wv"],
         params["wf"], params["wi"]], axis=1).astype(dtype)
    b_fused = jnp.concatenate(
        [params["bq"] * scale, params["bk"], params["bv"],
         params["bf"] + params["f_bias"], params["bi"]],
        axis=1).astype(jnp.float32)
    wo = params["wo"].astype(dtype)
    bo = params["bo"].astype(jnp.float32)

    grid = (B // block_b,)

    def _weight_spec(shape):
        # Grid-invariant operands: single-buffer them so the default second
        # DMA buffer does not waste VMEM (they are fetched exactly once).
        if single_buffer_weights and _HAS_PIPELINE_MODE:
            return pl.BlockSpec(shape, lambda b: (0, 0),
                                pipeline_mode=pl.Buffered(1))
        return pl.BlockSpec(shape, lambda b: (0, 0))

    in_specs = [
        # TODO(synk): sweep pl.Buffered(3) on x/out when per-step compute is
        # short (small T*D) and the activation DMA shows up exposed.
        pl.BlockSpec((block_b, T, D), lambda b: (b, 0, 0)),   # x
        _weight_spec((D, 5 * D)),                             # fused W_{q,k,v,f,i}
        _weight_spec((1, 5 * D)),                             # fused biases
        _weight_spec((D, D)),                                 # W_o
        _weight_spec((1, D)),                                 # b_o
    ]
    out_specs = pl.BlockSpec((block_b, T, D), lambda b: (b, 0, 0))

    # Scoped-VMEM budget: weights (single- or double-buffered) + double-
    # buffered x/out tiles + f32 temporaries, clamped per generation so there
    # is always headroom below the physical VMEM for Mosaic internal scratch.
    itemsize = jnp.dtype(dtype).itemsize
    rows = block_b * T
    g = _score_group(block_b, T)
    gt = g * T
    weight_bytes = ((w_fused.size + wo.size) * itemsize
                    + (b_fused.size + bo.size) * 4)
    weight_bufs = 1 if (single_buffer_weights and _HAS_PIPELINE_MODE) else 2
    io_bytes = 2 * 2 * rows * D * itemsize                    # x + out, 2-deep
    scratch_bytes = (rows * 5 * D * 4                         # fused projection
                     + rows * 6 * D * 4                       # q/k/v/f/i/mem
                     + 2 * (block_b // g) * gt * gt * 4)      # scores + p
    vmem_limit = int(min(
        max(weight_bufs * weight_bytes + io_bytes + scratch_bytes + (4 << 20),
            16 << 20),
        vmem_clamp))

    flops = (2 * B * T * D * (5 * D)            # fused projection
             + 4 * B * g * T * T * D            # q@k^T and attn@v (packed tiles)
             + 2 * B * T * D * D)               # output projection
    transcendentals = B * g * T * T + 2 * B * T * D
    bytes_accessed = 2 * B * T * D * itemsize + weight_bytes

    return pl.pallas_call(
        _mlstm_kernel,
        out_shape=jax.ShapeDtypeStruct((B, T, D), dtype),
        grid_spec=pltpu.PrefetchScalarGridSpec(
            num_scalar_prefetch=0,
            grid=grid,
            in_specs=in_specs,
            out_specs=out_specs,
        ),
        compiler_params=pltpu.CompilerParams(
            dimension_semantics=("parallel",),   # batch tiles shard across TCs
            vmem_limit_bytes=vmem_limit,
        ),
        cost_estimate=pl.CostEstimate(
            flops=int(flops),
            transcendentals=int(transcendentals),
            bytes_accessed=int(bytes_accessed),
        ),
    )(x, w_fused, b_fused, wo, bo)


def init_params(key, n_embd):
    """Deterministic init mimicking nn.Linear default (uniform +-1/sqrt(fan_in)).
    Weights stored as (D_in, D_out) so the forward computes x @ W + b."""
    bound = 1.0 / math.sqrt(n_embd)
    keys = jax.random.split(key, 12)
    names = ["q", "k", "v", "f", "i", "o"]
    params = {}
    for idx, name in enumerate(names):
        w = jax.random.uniform(
            keys[2 * idx], (n_embd, n_embd), jnp.float32, -bound, bound)
        b = jax.random.uniform(
            keys[2 * idx + 1], (1, n_embd), jnp.float32, -bound, bound)
        params[f"w{name}"] = w
        params[f"b{name}"] = b
    params["f_bias"] = jnp.ones((1, n_embd), jnp.float32)  # nn.Parameter(torch.ones)
    return params


def mlstm_reference(x, params):
    """Pure-JAX reference of the PyTorch forward (dropout = identity)."""
    D = x.shape[-1]
    lin = lambda w, b: x @ w + b
    q = lin(params["wq"], params["bq"])
    k = lin(params["wk"], params["bk"])
    v = lin(params["wv"], params["bv"])
    f = jax.nn.sigmoid(lin(params["wf"], params["bf"]) + params["f_bias"])
    i = jnp.exp(lin(params["wi"], params["bi"]))
    attn = jax.nn.softmax(jnp.einsum("btd,bsd->bts", q, k) / math.sqrt(D), axis=-1)
    memory = jnp.einsum("bts,bsd->btd", attn, v)
    memory = (f * memory + i * v) / (f + i)
    return memory @ params["wo"] + params["bo"]


if __name__ == "__main__":
    # batch=2, seq_len=8, n_embd=128 (lane-dense: last dim a multiple of 128).
    B, T, D = 2, 8, 128
    key = jax.random.PRNGKey(0)
    kx, kp, kx2 = jax.random.split(key, 3)
    x = jax.random.normal(kx, (B, T, D), jnp.float32)
    params = init_params(kp, D)

    single_buf = True
    try:
        out = jax.block_until_ready(mlstm_forward(x, params))
    except Exception:
        # Fallback for JAX versions whose pallas_call pipeline does not accept
        # pl.Buffered single-buffering on grid-invariant BlockSpecs.
        single_buf = False
        out = jax.block_until_ready(
            mlstm_forward(x, params, single_buffer_weights=False))

    ref = mlstm_reference(x, params)
    assert out.shape == (B, T, D)
    max_err = jnp.max(jnp.abs(out - ref))
    assert jnp.allclose(out, ref, atol=5e-3, rtol=5e-3), f"max abs err {max_err}"

    # Second (still small) shape exercises block_b > 1: the packed
    # block-diagonal lane-dense score path and a 4-step "parallel" grid.
    B2 = 8
    x2 = jax.random.normal(kx2, (B2, T, D), jnp.float32)
    out2 = jax.block_until_ready(
        mlstm_forward(x2, params, single_buffer_weights=single_buf))
    ref2 = mlstm_reference(x2, params)
    max_err2 = jnp.max(jnp.abs(out2 - ref2))
    assert jnp.allclose(out2, ref2, atol=5e-3, rtol=5e-3), (
        f"max abs err {max_err2}")

    print("KERNEL_OK")
</pallas_src>

<mosaic_0001>
module attributes {stable_mosaic.version = 11 : i64} {
  func.func @_mlstm_kernel(%arg0: i32, %arg1: memref<1x8x128xf32, #tpu.memory_space<vmem>>, %arg2: memref<128x640xf32, #tpu.memory_space<vmem>>, %arg3: memref<1x640xf32, #tpu.memory_space<vmem>>, %arg4: memref<128x128xf32, #tpu.memory_space<vmem>>, %arg5: memref<1x128xf32, #tpu.memory_space<vmem>>, %arg6: memref<1x8x128xf32, #tpu.memory_space<vmem>>) attributes {dimension_semantics = [#tpu.dimension_semantics<parallel>], iteration_bounds = array<i64: 2>, scalar_prefetch = 0 : i64, scratch_operands = 0 : i64, tpu.core_type = #tpu.core_type<tc>, window_params = [{transform_indices = @transform_0, window_bounds = array<i64: 1, 8, 128>}, {pipeline_mode = #tpu.pipeline_mode<synchronous>, transform_indices = @transform_1, window_bounds = array<i64: 128, 640>}, {pipeline_mode = #tpu.pipeline_mode<synchronous>, transform_indices = @transform_2, window_bounds = array<i64: 1, 640>}, {pipeline_mode = #tpu.pipeline_mode<synchronous>, transform_indices = @transform_3, window_bounds = array<i64: 128, 128>}, {pipeline_mode = #tpu.pipeline_mode<synchronous>, transform_indices = @transform_4, window_bounds = array<i64: 1, 128>}, {transform_indices = @transform_5, window_bounds = array<i64: 1, 8, 128>}]} {
    %c0 = arith.constant 0 : index
    %c0_0 = arith.constant 0 : index
    %c0_1 = arith.constant 0 : index
    %0 = vector.load %arg1[%c0, %c0_0, %c0_1] : memref<1x8x128xf32, #tpu.memory_space<vmem>>, vector<1x8x128xf32>
    %1 = vector.shape_cast %0 : vector<1x8x128xf32> to vector<8x128xf32>
    %c0_2 = arith.constant 0 : index
    %c0_3 = arith.constant 0 : index
    %2 = vector.load %arg2[%c0_2, %c0_3] : memref<128x640xf32, #tpu.memory_space<vmem>>, vector<128x640xf32>
    %cst = arith.constant dense<0.000000e+00> : vector<8x640xf32>
    %3 = tpu.matmul %1, %2, %cst {dimension_numbers = #tpu.dot_dimension_numbers<[1], [0], [0], [1], [0, 0, 1, 1], [], []>} : vector<8x128xf32>, vector<128x640xf32>, vector<8x640xf32> -> vector<8x640xf32>
    %c0_4 = arith.constant 0 : index
    %c0_5 = arith.constant 0 : index
    %4 = vector.load %arg3[%c0_4, %c0_5] : memref<1x640xf32, #tpu.memory_space<vmem>>, vector<1x640xf32>
    %5 = vector.broadcast %4 : vector<1x640xf32> to vector<8x640xf32>
    %6 = arith.addf %3, %5 : vector<8x640xf32>
    %7 = vector.extract_strided_slice %6 {offsets = [0, 0], sizes = [8, 128], strides = [1, 1]} : vector<8x640xf32> to vector<8x128xf32>
    %8 = vector.extract_strided_slice %6 {offsets = [0, 128], sizes = [8, 128], strides = [1, 1]} : vector<8x640xf32> to vector<8x128xf32>
    %9 = vector.extract_strided_slice %6 {offsets = [0, 256], sizes = [8, 128], strides = [1, 1]} : vector<8x640xf32> to vector<8x128xf32>
    %10 = vector.extract_strided_slice %6 {offsets = [0, 384], sizes = [8, 128], strides = [1, 1]} : vector<8x640xf32> to vector<8x128xf32>
    %11 = arith.negf %10 : vector<8x128xf32>
    %12 = math.exp %11 : vector<8x128xf32>
    %cst_6 = arith.constant 1.000000e+00 : f32
    %13 = vector.broadcast %cst_6 : f32 to vector<8x128xf32>
    %14 = arith.addf %13, %12 : vector<8x128xf32>
    %15 = arith.divf %13, %14 : vector<8x128xf32>
    %16 = vector.extract_strided_slice %6 {offsets = [0, 512], sizes = [8, 128], strides = [1, 1]} : vector<8x640xf32> to vector<8x128xf32>
    %17 = math.exp %16 : vector<8x128xf32>
    %18 = vector.shape_cast %7 : vector<8x128xf32> to vector<1x8x128xf32>
    %19 = vector.shape_cast %8 : vector<8x128xf32> to vector<1x8x128xf32>
    %20 = vector.shape_cast %9 : vector<8x128xf32> to vector<1x8x128xf32>
    "tpu.trace_start"() <{level = 10 : i32, message = "bqd,bkd->bqk"}> : () -> ()
    %cst_7 = arith.constant dense<0.000000e+00> : vector<1x8x8xf32>
    %21 = tpu.matmul %18, %19, %cst_7 {dimension_numbers = #tpu.dot_dimension_numbers<[2], [2], [1], [1], [0, 0, 0, 1, 1, 1], [0], [0]>} : vector<1x8x128xf32>, vector<1x8x128xf32>, vector<1x8x8xf32> -> vector<1x8x8xf32>
    "tpu.trace_stop"() : () -> ()
    %cst_8 = arith.constant dense<0xFF800000> : vector<1x8xf32>
    %22 = vector.multi_reduction <maximumf>, %21, %cst_8 [2] : vector<1x8x8xf32> to vector<1x8xf32>
    %23 = vector.shape_cast %22 : vector<1x8xf32> to vector<1x8x1xf32>
    %24 = vector.broadcast %23 : vector<1x8x1xf32> to vector<1x8x8xf32>
    %25 = arith.subf %21, %24 : vector<1x8x8xf32>
    %26 = math.exp %25 : vector<1x8x8xf32>
    %cst_9 = arith.constant dense<0.000000e+00> : vector<1x8xf32>
    %27 = vector.multi_reduction <add>, %26, %cst_9 [2] : vector<1x8x8xf32> to vector<1x8xf32>
    %28 = vector.shape_cast %27 : vector<1x8xf32> to vector<1x8x1xf32>
    %29 = tpu.reciprocal %28 {approx = true} : vector<1x8x1xf32> -> vector<1x8x1xf32>
    %30 = vector.broadcast %29 : vector<1x8x1xf32> to vector<1x8x8xf32>
    %31 = arith.mulf %26, %30 : vector<1x8x8xf32>
    "tpu.trace_start"() <{level = 10 : i32, message = "bqk,bkd->bqd"}> : () -> ()
    %cst_10 = arith.constant dense<0.000000e+00> : vector<1x8x128xf32>
    %32 = tpu.matmul %31, %20, %cst_10 {dimension_numbers = #tpu.dot_dimension_numbers<[2], [1], [1], [2], [0, 0, 0, 1, 1, 2], [0], [0]>} : vector<1x8x8xf32>, vector<1x8x128xf32>, vector<1x8x128xf32> -> vector<1x8x128xf32>
    "tpu.trace_stop"() : () -> ()
    %33 = vector.shape_cast %32 : vector<1x8x128xf32> to vector<8x128xf32>
    %34 = arith.mulf %15, %33 : vector<8x128xf32>
    %35 = arith.mulf %17, %9 : vector<8x128xf32>
    %36 = arith.addf %34, %35 : vector<8x128xf32>
    %37 = arith.addf %15, %17 : vector<8x128xf32>
    %38 = arith.divf %36, %37 : vector<8x128xf32>
    %c0_11 = arith.constant 0 : index
    %c0_12 = arith.constant 0 : index
    %39 = vector.load %arg4[%c0_11, %c0_12] : memref<128x128xf32, #tpu.memory_space<vmem>>, vector<128x128xf32>
    %cst_13 = arith.constant dense<0.000000e+00> : vector<8x128xf32>
    %40 = tpu.matmul %38, %39, %cst_13 {dimension_numbers = #tpu.dot_dimension_numbers<[1], [0], [0], [1], [0, 0, 1, 1], [], []>} : vector<8x128xf32>, vector<128x128xf32>, vector<8x128xf32> -> vector<8x128xf32>
    %c0_14 = arith.constant 0 : index
    %c0_15 = arith.constant 0 : index
    %41 = vector.load %arg5[%c0_14, %c0_15] : memref<1x128xf32, #tpu.memory_space<vmem>>, vector<1x128xf32>
    %42 = vector.broadcast %41 : vector<1x128xf32> to vector<8x128xf32>
    %43 = arith.addf %40, %42 : vector<8x128xf32>
    %44 = vector.shape_cast %43 : vector<8x128xf32> to vector<1x8x128xf32>
    %c0_16 = arith.constant 0 : index
    %c0_17 = arith.constant 0 : index
    %c0_18 = arith.constant 0 : index
    %45 = vector.load %arg6[%c0_16, %c0_17, %c0_18] : memref<1x8x128xf32, #tpu.memory_space<vmem>>, vector<1x8x128xf32>
    tpu.vector_store %arg6[%c0_16, %c0_17, %c0_18], %44 {strides = array<i32>} : memref<1x8x128xf32, #tpu.memory_space<vmem>>, vector<1x8x128xf32>,
    return
  }
  func.func @transform_0(%arg0: i32) -> (i32, i32, i32) {
    %c0_i32 = arith.constant 0 : i32
    %c0_i32_0 = arith.constant 0 : i32
    %c0_i32_1 = arith.constant 0 : i32
    return %arg0, %c0_i32, %c0_i32_0 : i32, i32, i32
  }
  func.func @transform_1(%arg0: i32) -> (i32, i32) {
    %c0_i32 = arith.constant 0 : i32
    %c0_i32_0 = arith.constant 0 : i32
    %c0_i32_1 = arith.constant 0 : i32
    return %c0_i32, %c0_i32_0 : i32, i32
  }
  func.func @transform_2(%arg0: i32) -> (i32, i32) {
    %c0_i32 = arith.constant 0 : i32
    %c0_i32_0 = arith.constant 0 : i32
    %c0_i32_1 = arith.constant 0 : i32
    return %c0_i32, %c0_i32_0 : i32, i32
  }
  func.func @transform_3(%arg0: i32) -> (i32, i32) {
    %c0_i32 = arith.constant 0 : i32
    %c0_i32_0 = arith.constant 0 : i32
    %c0_i32_1 = arith.constant 0 : i32
    return %c0_i32, %c0_i32_0 : i32, i32
  }
  func.func @transform_4(%arg0: i32) -> (i32, i32) {
    %c0_i32 = arith.constant 0 : i32
    %c0_i32_0 = arith.constant 0 : i32
    %c0_i32_1 = arith.constant 0 : i32
    return %c0_i32, %c0_i32_0 : i32, i32
  }
  func.func @transform_5(%arg0: i32) -> (i32, i32, i32) {
    %c0_i32 = arith.constant 0 : i32
    %c0_i32_0 = arith.constant 0 : i32
    %c0_i32_1 = arith.constant 0 : i32
    return %arg0, %c0_i32, %c0_i32_0 : i32, i32, i32
  }
}

module attributes {stable_mosaic.version = 11 : i64} {
  func.func @_mlstm_kernel(%arg0: i32, %arg1: memref<1x8x128xf32, #tpu.memory_space<vmem>>, %arg2: memref<128x640xf32, #tpu.memory_space<vmem>>, %arg3: memref<1x640xf32, #tpu.memory_space<vmem>>, %arg4: memref<128x128xf32, #tpu.memory_space<vmem>>, %arg5: memref<1x128xf32, #tpu.memory_space<vmem>>, %arg6: memref<1x8x128xf32, #tpu.memory_space<vmem>>) attributes {dimension_semantics = [#tpu.dimension_semantics<parallel>], iteration_bounds = array<i64: 2>, scalar_prefetch = 0 : i64, scratch_operands = 0 : i64, tpu.core_type = #tpu.core_type<tc>, window_params = [{transform_indices = @transform_0, window_bounds = array<i64: 1, 8, 128>}, {pipeline_mode = #tpu.pipeline_mode<synchronous>, transform_indices = @transform_1, window_bounds = array<i64: 128, 640>}, {pipeline_mode = #tpu.pipeline_mode<synchronous>, transform_indices = @transform_2, window_bounds = array<i64: 1, 640>}, {pipeline_mode = #tpu.pipeline_mode<synchronous>, transform_indices = @transform_3, window_bounds = array<i64: 128, 128>}, {pipeline_mode = #tpu.pipeline_mode<synchronous>, transform_indices = @transform_4, window_bounds = array<i64: 1, 128>}, {transform_indices = @transform_5, window_bounds = array<i64: 1, 8, 128>}]} {
    %c0 = arith.constant 0 : index
    %c0_0 = arith.constant 0 : index
    %c0_1 = arith.constant 0 : index
    %0 = vector.load %arg1[%c0, %c0_0, %c0_1] : memref<1x8x128xf32, #tpu.memory_space<vmem>>, vector<1x8x128xf32>
    %1 = vector.shape_cast %0 : vector<1x8x128xf32> to vector<8x128xf32>
    %c0_2 = arith.constant 0 : index
    %c0_3 = arith.constant 0 : index
    %2 = vector.load %arg2[%c0_2, %c0_3] : memref<128x640xf32, #tpu.memory_space<vmem>>, vector<128x640xf32>
    %cst = arith.constant dense<0.000000e+00> : vector<8x640xf32>
    %3 = tpu.matmul %1, %2, %cst {dimension_numbers = #tpu.dot_dimension_numbers<[1], [0], [0], [1], [0, 0, 1, 1], [], []>} : vector<8x128xf32>, vector<128x640xf32>, vector<8x640xf32> -> vector<8x640xf32>
    %c0_4 = arith.constant 0 : index
    %c0_5 = arith.constant 0 : index
    %4 = vector.load %arg3[%c0_4, %c0_5] : memref<1x640xf32, #tpu.memory_space<vmem>>, vector<1x640xf32>
    %5 = vector.broadcast %4 : vector<1x640xf32> to vector<8x640xf32>
    %6 = arith.addf %3, %5 : vector<8x640xf32>
    %7 = vector.extract_strided_slice %6 {offsets = [0, 0], sizes = [8, 128], strides = [1, 1]} : vector<8x640xf32> to vector<8x128xf32>
    %8 = vector.extract_strided_slice %6 {offsets = [0, 128], sizes = [8, 128], strides = [1, 1]} : vector<8x640xf32> to vector<8x128xf32>
    %9 = vector.extract_strided_slice %6 {offsets = [0, 256], sizes = [8, 128], strides = [1, 1]} : vector<8x640xf32> to vector<8x128xf32>
    %10 = vector.extract_strided_slice %6 {offsets = [0, 384], sizes = [8, 128], strides = [1, 1]} : vector<8x640xf32> to vector<8x128xf32>
    %11 = arith.negf %10 : vector<8x128xf32>
    %12 = math.exp %11 : vector<8x128xf32>
    %cst_6 = arith.constant 1.000000e+00 : f32
    %13 = vector.broadcast %cst_6 : f32 to vector<8x128xf32>
    %14 = arith.addf %13, %12 : vector<8x128xf32>
    %15 = arith.divf %13, %14 : vector<8x128xf32>
    %16 = vector.extract_strided_slice %6 {offsets = [0, 512], sizes = [8, 128], strides = [1, 1]} : vector<8x640xf32> to vector<8x128xf32>
    %17 = math.exp %16 : vector<8x128xf32>
    %18 = vector.shape_cast %7 : vector<8x128xf32> to vector<1x8x128xf32>
    %19 = vector.shape_cast %8 : vector<8x128xf32> to vector<1x8x128xf32>
    %20 = vector.shape_cast %9 : vector<8x128xf32> to vector<1x8x128xf32>
    "tpu.trace_start"() <{level = 10 : i32, message = "bqd,bkd->bqk"}> : () -> ()
    %cst_7 = arith.constant dense<0.000000e+00> : vector<1x8x8xf32>
    %21 = tpu.matmul %18, %19, %cst_7 {dimension_numbers = #tpu.dot_dimension_numbers<[2], [2], [1], [1], [0, 0, 0, 1, 1, 1], [0], [0]>} : vector<1x8x128xf32>, vector<1x8x128xf32>, vector<1x8x8xf32> -> vector<1x8x8xf32>
    "tpu.trace_stop"() : () -> ()
    %cst_8 = arith.constant dense<0xFF800000> : vector<1x8xf32>
    %22 = vector.multi_reduction <maximumf>, %21, %cst_8 [2] : vector<1x8x8xf32> to vector<1x8xf32>
    %23 = vector.shape_cast %22 : vector<1x8xf32> to vector<1x8x1xf32>
    %24 = vector.broadcast %23 : vector<1x8x1xf32> to vector<1x8x8xf32>
    %25 = arith.subf %21, %24 : vector<1x8x8xf32>
    %26 = math.exp %25 : vector<1x8x8xf32>
    %cst_9 = arith.constant dense<0.000000e+00> : vector<1x8xf32>
    %27 = vector.multi_reduction <add>, %26, %cst_9 [2] : vector<1x8x8xf32> to vector<1x8xf32>
    %28 = vector.shape_cast %27 : vector<1x8xf32> to vector<1x8x1xf32>
    %29 = tpu.reciprocal %28 {approx = true} : vector<1x8x1xf32> -> vector<1x8x1xf32>
    %30 = vector.broadcast %29 : vector<1x8x1xf32> to vector<1x8x8xf32>
    %31 = arith.mulf %26, %30 : vector<1x8x8xf32>
    "tpu.trace_start"() <{level = 10 : i32, message = "bqk,bkd->bqd"}> : () -> ()
    %cst_10 = arith.constant dense<0.000000e+00> : vector<1x8x128xf32>
    %32 = tpu.matmul %31, %20, %cst_10 {dimension_numbers = #tpu.dot_dimension_numbers<[2], [1], [1], [2], [0, 0, 0, 1, 1, 2], [0], [0]>} : vector<1x8x8xf32>, vector<1x8x128xf32>, vector<1x8x128xf32> -> vector<1x8x128xf32>
    "tpu.trace_stop"() : () -> ()
    %33 = vector.shape_cast %32 : vector<1x8x128xf32> to vector<8x128xf32>
    %34 = arith.mulf %15, %33 : vector<8x128xf32>
    %35 = arith.mulf %17, %9 : vector<8x128xf32>
    %36 = arith.addf %34, %35 : vector<8x128xf32>
    %37 = arith.addf %15, %17 : vector<8x128xf32>
    %38 = arith.divf %36, %37 : vector<8x128xf32>
    %c0_11 = arith.constant 0 : index
    %c0_12 = arith.constant 0 : index
    %39 = vector.load %arg4[%c0_11, %c0_12] : memref<128x128xf32, #tpu.memory_space<vmem>>, vector<128x128xf32>
    %cst_13 = arith.constant dense<0.000000e+00> : vector<8x128xf32>
    %40 = tpu.matmul %38, %39, %cst_13 {dimension_numbers = #tpu.dot_dimension_numbers<[1], [0], [0], [1], [0, 0, 1, 1], [], []>} : vector<8x128xf32>, vector<128x128xf32>, vector<8x128xf32> -> vector<8x128xf32>
    %c0_14 = arith.constant 0 : index
    %c0_15 = arith.constant 0 : index
    %41 = vector.load %arg5[%c0_14, %c0_15] : memref<1x128xf32, #tpu.memory_space<vmem>>, vector<1x128xf32>
    %42 = vector.broadcast %41 : vector<1x128xf32> to vector<8x128xf32>
    %43 = arith.addf %40, %42 : vector<8x128xf32>
    %44 = vector.shape_cast %43 : vector<8x128xf32> to vector<1x8x128xf32>
    %c0_16 = arith.constant 0 : index
    %c0_17 = arith.constant 0 : index
    %c0_18 = arith.constant 0 : index
    %45 = vector.load %arg6[%c0_16, %c0_17, %c0_18] : memref<1x8x128xf32, #tpu.memory_space<vmem>>, vector<1x8x128xf32>
    tpu.vector_store %arg6[%c0_16, %c0_17, %c0_18], %44 {strides = array<i32>} : memref<1x8x128xf32, #tpu.memory_space<vmem>>, vector<1x8x128xf32>,
    return
  }
  func.func @transform_0(%arg0: i32) -> (i32, i32, i32) {
    %c0_i32 = arith.constant 0 : i32
    %c0_i32_0 = arith.constant 0 : i32
    %c0_i32_1 = arith.constant 0 : i32
    return %arg0, %c0_i32, %c0_i32_0 : i32, i32, i32
  }
  func.func @transform_1(%arg0: i32) -> (i32, i32) {
    %c0_i32 = arith.constant 0 : i32
    %c0_i32_0 = arith.constant 0 : i32
    %c0_i32_1 = arith.constant 0 : i32
    return %c0_i32, %c0_i32_0 : i32, i32
  }
  func.func @transform_2(%arg0: i32) -> (i32, i32) {
    %c0_i32 = arith.constant 0 : i32
    %c0_i32_0 = arith.constant 0 : i32
    %c0_i32_1 = arith.constant 0 : i32
    return %c0_i32, %c0_i32_0 : i32, i32
  }
  func.func @transform_3(%arg0: i32) -> (i32, i32) {
    %c0_i32 = arith.constant 0 : i32
    %c0_i32_0 = arith.constant 0 : i32
    %c0_i32_1 = arith.constant 0 : i32
    return %c0_i32, %c0_i32_0 : i32, i32
  }
  func.func @transform_4(%arg0: i32) -> (i32, i32) {
    %c0_i32 = arith.constant 0 : i32
    %c0_i32_0 = arith.constant 0 : i32
    %c0_i32_1 = arith.constant 0 : i32
    return %c0_i32, %c0_i32_0 : i32, i32
  }
  func.func @transform_5(%arg0: i32) -> (i32, i32, i32) {
    %c0_i32 = arith.constant 0 : i32
    %c0_i32_0 = arith.constant 0 : i32
    %c0_i32_1 = arith.constant 0 : i32
    return %arg0, %c0_i32, %c0_i32_0 : i32, i32, i32
  }
}

</mosaic_0001>

<llo_original>
// kernel: mlstm_forward.1
$region0: #{mlstm_forward.1}
  #allocation0 [shape = 'u32[]', space=smem, size = 0x4, offset = 0x4, fixed_abs, tag = 'smem constant byte address 0x4 - core index']
  #allocation1 [shape = 'u32[144,128]{1,0:T(1,128)}', space=vmem, size = 0x12000, scoped, tag = 'internal scratch']
  %s0 = inlined_call_operand.vmem [shape: f32[2,8,128], index: 0, kind: input, shape index: {}]
  %s1 = inlined_call_operand.vmem [shape: f32[128,640], index: 1, kind: input, shape index: {}]
  %s2 = inlined_call_operand.vmem [shape: f32[1,640], index: 2, kind: input, shape index: {}]
  %s3 = inlined_call_operand.vmem [shape: f32[128,128], index: 3, kind: input, shape index: {}]
  %s4 = inlined_call_operand.vmem [shape: f32[1,128], index: 4, kind: input, shape index: {}]
  %s5 = inlined_call_operand.hbm [shape: f32[2,8,128], index: 5, kind: output, shape index: {}]
  %s6 = sld [smem:[#allocation0]]
  $region53: #{mlstm_forward.1} parent=0
    _
  %s8 = ssub.s32 1, %s6
  %s9 = scalar_select 0, %s8, %s6
  $region1: #{mlstm_forward.1} parent=0
    #allocation2 [shape = 'u8[8192]{0}', space=vmem, size = 0x2000, scoped, tag = 'output window, operand 0']
    #allocation3 [shape = 's32[2]{0}', space=sflag, size = 0x8, scoped, tag = 'scoped memory for mlstm_forward.1']
    %10 = vsyncpa [#allocation3], 0
    %s11 = scalar_lea.sflag [#allocation3], 1
    %12 = vsyncpa %s11, 0
    loop: start=0, step=1, limit=4
    $region2: #{mlstm_forward.1} parent=1 // loop_pre_header
      _
    $region3: #{mlstm_forward.1} parent=1 // loop_header
      %s14 = sphi 0, %s18
      %p15 = scmp.ge.s32.totalorder %s14, 4
      %s24 = sphi 0, %s26
      %s27 = sphi 0, %s24
      %s28 = sphi 0, %s27
      %s44 = sphi 0, %s28
      %s48 = sphi 0, %s48
      %s50 = sphi 0, %s48
      %s51 = sphi 0, %s50
      %s65 = sphi 0, %s51
      %s69 = sphi 0, %s69
      %s71 = sphi 0, %s69
      %s72 = sphi 0, %s71
      %s86 = sphi 0, %s72
      %s90 = sphi 0, %s90
      %s92 = sphi 0, %s90
      %s93 = sphi 0, %s92
      %s107 = sphi 0, %s93
      %s111 = sphi 0, %s111
      %s113 = sphi 0, %s111
      %s114 = sphi 0, %s113
      %s128 = sphi 0, %s114
      %s134 = sphi 0, %s136
      %s137 = sphi 0, %s134
      %s138 = sphi 0, %s137
      %s154 = sphi 0, %s138
    $region4: #{mlstm_forward.1} parent=1 // loop_header_branch
      %17 = sbr.rel (%p15) target = $region8
    $region5: #{mlstm_forward.1} parent=1 // loop_body
      %s19 = ssub.s32 %s14, 1
      %s20 = ssub.s32 %s14, 2
      %s21 = sadd.s32 %s14, 1
      %s22 = ssub.s32 %s14, %s21
      %p23 = scmp.eq.s32.totalorder %s22, 0
      %s25 = sadd.s32 %s24, 1
      %s26 = scalar_select %p23, %s24, %s25
      %p29 = pneg %p23
      %p30 = scmp.eq.s32.totalorder %s14, 1
      %p31 = por %p29, %p30
      %p32 = scmp.ne.s32.totalorder %s24, %s27
      %p33 = scmp.eq.s32.totalorder %s14, 0
      %p34 = por %p32, %p33
      %p35 = scmp.ne.s32.totalorder %s24, %s27
      %p36 = scmp.eq.s32.totalorder %s19, 1
      %p37 = por %p35, %p36
      %p38 = scmp.ne.s32.totalorder %s27, %s28
      %p39 = scmp.eq.s32.totalorder %s19, 0
      %p40 = por %p38, %p39
      %p41 = scmp.ne.s32.totalorder %s27, %s28
      %p42 = scmp.eq.s32.totalorder %s20, 1
      %p43 = por %p41, %p42
      %p45 = scmp.ne.s32.totalorder %s28, %s44
      %p46 = scmp.eq.s32.totalorder %s20, 0
      %p47 = por %p45, %p46
      %s49 = sadd.s32 %s48, 1
      %p52 = scmp.eq.s32.totalorder %s14, 1
      %p53 = scmp.ne.s32.totalorder %s48, %s50
      %p54 = scmp.eq.s32.totalorder %s14, 0
      %p55 = por %p53, %p54
      %p56 = scmp.ne.s32.totalorder %s48, %s50
      %p57 = scmp.eq.s32.totalorder %s19, 1
      %p58 = por %p56, %p57
      %p59 = scmp.ne.s32.totalorder %s50, %s51
      %p60 = scmp.eq.s32.totalorder %s19, 0
      %p61 = por %p59, %p60
      %p62 = scmp.ne.s32.totalorder %s50, %s51
      %p63 = scmp.eq.s32.totalorder %s20, 1
      %p64 = por %p62, %p63
      %p66 = scmp.ne.s32.totalorder %s51, %s65
      %p67 = scmp.eq.s32.totalorder %s20, 0
      %p68 = por %p66, %p67
      %s70 = sadd.s32 %s69, 1
      %p73 = scmp.eq.s32.totalorder %s14, 1
      %p74 = scmp.ne.s32.totalorder %s69, %s71
      %p75 = scmp.eq.s32.totalorder %s14, 0
      %p76 = por %p74, %p75
      %p77 = scmp.ne.s32.totalorder %s69, %s71
      %p78 = scmp.eq.s32.totalorder %s19, 1
      %p79 = por %p77, %p78
      %p80 = scmp.ne.s32.totalorder %s71, %s72
      %p81 = scmp.eq.s32.totalorder %s19, 0
      %p82 = por %p80, %p81
      %p83 = scmp.ne.s32.totalorder %s71, %s72
      %p84 = scmp.eq.s32.totalorder %s20, 1
      %p85 = por %p83, %p84
      %p87 = scmp.ne.s32.totalorder %s72, %s86
      %p88 = scmp.eq.s32.totalorder %s20, 0
      %p89 = por %p87, %p88
      %s91 = sadd.s32 %s90, 1
      %p94 = scmp.eq.s32.totalorder %s14, 1
      %p95 = scmp.ne.s32.totalorder %s90, %s92
      %p96 = scmp.eq.s32.totalorder %s14, 0
      %p97 = por %p95, %p96
      %p98 = scmp.ne.s32.totalorder %s90, %s92
      %p99 = scmp.eq.s32.totalorder %s19, 1
      %p100 = por %p98, %p99
      %p101 = scmp.ne.s32.totalorder %s92, %s93
      %p102 = scmp.eq.s32.totalorder %s19, 0
      %p103 = por %p101, %p102
      %p104 = scmp.ne.s32.totalorder %s92, %s93
      %p105 = scmp.eq.s32.totalorder %s20, 1
      %p106 = por %p104, %p105
      %p108 = scmp.ne.s32.totalorder %s93, %s107
      %p109 = scmp.eq.s32.totalorder %s20, 0
      %p110 = por %p108, %p109
      %s112 = sadd.s32 %s111, 1
      %p115 = scmp.eq.s32.totalorder %s14, 1
      %p116 = scmp.ne.s32.totalorder %s111, %s113
      %p117 = scmp.eq.s32.totalorder %s14, 0
      %p118 = por %p116, %p117
      %p119 = scmp.ne.s32.totalorder %s111, %s113
      %p120 = scmp.eq.s32.totalorder %s19, 1
      %p121 = por %p119, %p120
      %p122 = scmp.ne.s32.totalorder %s113, %s114
      %p123 = scmp.eq.s32.totalorder %s19, 0
      %p124 = por %p122, %p123
      %p125 = scmp.ne.s32.totalorder %s113, %s114
      %p126 = scmp.eq.s32.totalorder %s20, 1
      %p127 = por %p125, %p126
      %p129 = scmp.ne.s32.totalorder %s114, %s128
      %p130 = scmp.eq.s32.totalorder %s20, 0
      %p131 = por %p129, %p130
      %s132 = ssub.s32 %s14, %s21
      %p133 = scmp.eq.s32.totalorder %s132, 0
      %s135 = sadd.s32 %s134, 1
      %s136 = scalar_select %p133, %s134, %s135
      %p139 = pneg %p133
      %p140 = scmp.eq.s32.totalorder %s14, 1
      %p141 = por %p139, %p140
      %p142 = scmp.ne.s32.totalorder %s134, %s137
      %p143 = scmp.eq.s32.totalorder %s14, 0
      %p144 = por %p142, %p143
      %p145 = scmp.ne.s32.totalorder %s134, %s137
      %p146 = scmp.eq.s32.totalorder %s19, 1
      %p147 = por %p145, %p146
      %p148 = scmp.ne.s32.totalorder %s137, %s138
      %p149 = scmp.eq.s32.totalorder %s19, 0
      %p150 = por %p148, %p149
      %p151 = scmp.ne.s32.totalorder %s137, %s138
      %p152 = scmp.eq.s32.totalorder %s20, 1
      %p153 = por %p151, %p152
      %p155 = scmp.ne.s32.totalorder %s138, %s154
      %p156 = scmp.eq.s32.totalorder %s20, 0
      %p157 = por %p155, %p156
      %p158 = scmp.le.s32.totalorder 1, %s14
      %p159 = scmp.lt.s32.totalorder %s14, 3
      %p160 = pnand %p158, %p159
      %p161 = pneg %p160
      // Predicated region
      $region9: #{mlstm_forward.1} parent=5 // pred_check
        _
      $region10: #{mlstm_forward.1} parent=5 // pred_check_branch
        %163 = sbr.rel (%p160) target = $region12
      $region11: #{mlstm_forward.1} parent=5 // pred_region
        %s164 = ssub.s32 %s14, 1
        // Predicated region
        $region13: #{mlstm_forward.1} parent=11 // pred_check
          %p165 = pneg %p61
        $region14: #{mlstm_forward.1} parent=11 // pred_check_branch
          %167 = sbr.rel (%p165) target = $region16
        $region15: #{mlstm_forward.1} parent=11 // pred_region
          _
        $region16: #{mlstm_forward.1} parent=11 // pred_fallthru
          _
        // Predicated region
        $region17: #{mlstm_forward.1} parent=11 // pred_check
          %p168 = pneg %p82
        $region18: #{mlstm_forward.1} parent=11 // pred_check_branch
          %170 = sbr.rel (%p168) target = $region20
        $region19: #{mlstm_forward.1} parent=11 // pred_region
          _
        $region20: #{mlstm_forward.1} parent=11 // pred_fallthru
          _
        // Predicated region
        $region21: #{mlstm_forward.1} parent=11 // pred_check
          %p171 = pneg %p103
        $region22: #{mlstm_forward.1} parent=11 // pred_check_branch
          %173 = sbr.rel (%p171) target = $region24
        $region23: #{mlstm_forward.1} parent=11 // pred_region
          _
        $region24: #{mlstm_forward.1} parent=11 // pred_fallthru
          _
        // Predicated region
        $region25: #{mlstm_forward.1} parent=11 // pred_check
          %p174 = pneg %p124
        $region26: #{mlstm_forward.1} parent=11 // pred_check_branch
          %176 = sbr.rel (%p174) target = $region28
        $region27: #{mlstm_forward.1} parent=11 // pred_region
          _
        $region28: #{mlstm_forward.1} parent=11 // pred_fallthru
          _
      $region12: #{mlstm_forward.1} parent=5 // pred_fallthru
        _
      %p177 = scmp.lt.s32.totalorder %s14, 2
      // Predicated region
      $region29: #{mlstm_forward.1} parent=5 // pred_check
        %p178 = pneg %p177
      $region30: #{mlstm_forward.1} parent=5 // pred_check_branch
        %180 = sbr.rel (%p178) target = $region32
      $region31: #{mlstm_forward.1} parent=5 // pred_region
        // Predicated region
        $region33: #{mlstm_forward.1} parent=31 // pred_check
          %p181 = pneg %p34
        $region34: #{mlstm_forward.1} parent=31 // pred_check_branch
          %183 = sbr.rel (%p181) target = $region36
        $region35: #{mlstm_forward.1} parent=31 // pred_region
          %p184 = scmp.lt.s32.totalorder %s14, 1
          %s185 = scalar_select %p184, %s14, 1
          %s186 = smul.addr %s185, 8
          %s187 = scalar_lea.vmem %s0, %s186
        $region36: #{mlstm_forward.1} parent=31 // pred_fallthru
          _
      $region32: #{mlstm_forward.1} parent=5 // pred_fallthru
        _
      %p188 = scmp.le.s32.totalorder 1, %s14
      %p189 = scmp.lt.s32.totalorder %s14, 3
      %p190 = pnand %p188, %p189
      %p191 = pneg %p190
      // Predicated region
      $region37: #{mlstm_forward.1} parent=5 // pred_check
        _
      $region38: #{mlstm_forward.1} parent=5 // pred_check_branch
        %193 = sbr.rel (%p190) target = $region40
      $region39: #{mlstm_forward.1} parent=5 // pred_region
        %s194 = ssub.s32 %s14, 1
        %p195 = scmp.lt.s32.totalorder %s19, 1
        %s196 = scalar_select %p195, %s19, 1
        %s197 = smul.addr %s196, 8
        %s198 = scalar_lea.vmem %s0, %s197
        %p199 = pneg %p40
        %p200 = pneg %p37
        %p201 = pneg %p61
        %p202 = pneg %p58
        %p203 = pneg %p82
        %p204 = pneg %p79
        %p205 = pneg %p103
        %p206 = pneg %p100
        %p207 = pneg %p124
        %p208 = pneg %p121
        %p209 = pneg %p150
        %p210 = pneg %p147
        %s211 = sand.u32 %s137, 1
        %s212 = scalar_lea.sflag [#allocation3], %s211
        %s213 = sand.u32 %s137, 1
        %s214 = smul.addr %s213, 8
        %s215 = scalar_lea.vmem [#allocation2], %s214
        %p216 = scmp.lt.s32.totalorder %s19, 1
        %s217 = scalar_select %p216, %s19, 1
        %s218 = smul.addr %s217, 8
        %s219 = scalar_lea.vmem %s0, %s218
        %v220 = vld [vmem:[%s219] sm:$0xff]
        %v221 = vld [vmem:[%s1] sm:$0xff]
        %v222 = vld [vmem:[%s1 + $0x8] sm:$0xff]
        %v223 = vld [vmem:[%s1 + $0x10] sm:$0xff]
        %v224 = vld [vmem:[%s1 + $0x18] sm:$0xff]
        %v225 = vld [vmem:[%s1 + $0x20] sm:$0xff]
        %v226 = vld [vmem:[%s1 + $0x28] sm:$0xff]
        %v227 = vld [vmem:[%s1 + $0x30] sm:$0xff]
        %v228 = vld [vmem:[%s1 + $0x38] sm:$0xff]
        %v229 = vld [vmem:[%s1 + $0x40] sm:$0xff]
        %v230 = vld [vmem:[%s1 + $0x48] sm:$0xff]
        %v231 = vld [vmem:[%s1 + $0x50] sm:$0xff]
        %v232 = vld [vmem:[%s1 + $0x58] sm:$0xff]
        %v233 = vld [vmem:[%s1 + $0x60] sm:$0xff]
        %v234 = vld [vmem:[%s1 + $0x68] sm:$0xff]
        %v235 = vld [vmem:[%s1 + $0x70] sm:$0xff]
        %v236 = vld [vmem:[%s1 + $0x78] sm:$0xff]
        %v237 = vld [vmem:[%s1 + $0x80] sm:$0xff]
        %v238 = vld [vmem:[%s1 + $0x88] sm:$0xff]
        %v239 = vld [vmem:[%s1 + $0x90] sm:$0xff]
        %v240 = vld [vmem:[%s1 + $0x98] sm:$0xff]
        %v241 = vld [vmem:[%s1 + $0xa0] sm:$0xff]
        %v242 = vld [vmem:[%s1 + $0xa8] sm:$0xff]
        %v243 = vld [vmem:[%s1 + $0xb0] sm:$0xff]
        %v244 = vld [vmem:[%s1 + $0xb8] sm:$0xff]
        %v245 = vld [vmem:[%s1 + $0xc0] sm:$0xff]
        %v246 = vld [vmem:[%s1 + $0xc8] sm:$0xff]
        %v247 = vld [vmem:[%s1 + $0xd0] sm:$0xff]
        %v248 = vld [vmem:[%s1 + $0xd8] sm:$0xff]
        %v249 = vld [vmem:[%s1 + $0xe0] sm:$0xff]
        %v250 = vld [vmem:[%s1 + $0xe8] sm:$0xff]
        %v251 = vld [vmem:[%s1 + $0xf0] sm:$0xff]
        %v252 = vld [vmem:[%s1 + $0xf8] sm:$0xff]
        %v253 = vld [vmem:[%s1 + $0x100] sm:$0xff]
        %v254 = vld [vmem:[%s1 + $0x108] sm:$0xff]
        %v255 = vld [vmem:[%s1 + $0x110] sm:$0xff]
        %v256 = vld [vmem:[%s1 + $0x118] sm:$0xff]
        %v257 = vld [vmem:[%s1 + $0x120] sm:$0xff]
        %v258 = vld [vmem:[%s1 + $0x128] sm:$0xff]
        %v259 = vld [vmem:[%s1 + $0x130] sm:$0xff]
        %v260 = vld [vmem:[%s1 + $0x138] sm:$0xff]
        %v261 = vld [vmem:[%s1 + $0x140] sm:$0xff]
        %v262 = vld [vmem:[%s1 + $0x148] sm:$0xff]
        %v263 = vld [vmem:[%s1 + $0x150] sm:$0xff]
        %v264 = vld [vmem:[%s1 + $0x158] sm:$0xff]
        %v265 = vld [vmem:[%s1 + $0x160] sm:$0xff]
        %v266 = vld [vmem:[%s1 + $0x168] sm:$0xff]
        %v267 = vld [vmem:[%s1 + $0x170] sm:$0xff]
        %v268 = vld [vmem:[%s1 + $0x178] sm:$0xff]
        %v269 = vld [vmem:[%s1 + $0x180] sm:$0xff]
        %v270 = vld [vmem:[%s1 + $0x188] sm:$0xff]
        %v271 = vld [vmem:[%s1 + $0x190] sm:$0xff]
        %v272 = vld [vmem:[%s1 + $0x198] sm:$0xff]
        %v273 = vld [vmem:[%s1 + $0x1a0] sm:$0xff]
        %v274 = vld [vmem:[%s1 + $0x1a8] sm:$0xff]
        %v275 = vld [vmem:[%s1 + $0x1b0] sm:$0xff]
        %v276 = vld [vmem:[%s1 + $0x1b8] sm:$0xff]
        %v277 = vld [vmem:[%s1 + $0x1c0] sm:$0xff]
        %v278 = vld [vmem:[%s1 + $0x1c8] sm:$0xff]
        %v279 = vld [vmem:[%s1 + $0x1d0] sm:$0xff]
        %v280 = vld [vmem:[%s1 + $0x1d8] sm:$0xff]
        %v281 = vld [vmem:[%s1 + $0x1e0] sm:$0xff]
        %v282 = vld [vmem:[%s1 + $0x1e8] sm:$0xff]
        %v283 = vld [vmem:[%s1 + $0x1f0] sm:$0xff]
        %v284 = vld [vmem:[%s1 + $0x1f8] sm:$0xff]
        %v285 = vld [vmem:[%s1 + $0x200] sm:$0xff]
        %v286 = vld [vmem:[%s1 + $0x208] sm:$0xff]
        %v287 = vld [vmem:[%s1 + $0x210] sm:$0xff]
        %v288 = vld [vmem:[%s1 + $0x218] sm:$0xff]
        %v289 = vld [vmem:[%s1 + $0x220] sm:$0xff]
        %v290 = vld [vmem:[%s1 + $0x228] sm:$0xff]
        %v291 = vld [vmem:[%s1 + $0x230] sm:$0xff]
        %v292 = vld [vmem:[%s1 + $0x238] sm:$0xff]
        %v293 = vld [vmem:[%s1 + $0x240] sm:$0xff]
        %v294 = vld [vmem:[%s1 + $0x248] sm:$0xff]
        %v295 = vld [vmem:[%s1 + $0x250] sm:$0xff]
        %v296 = vld [vmem:[%s1 + $0x258] sm:$0xff]
        %v297 = vld [vmem:[%s1 + $0x260] sm:$0xff]
        %v298 = vld [vmem:[%s1 + $0x268] sm:$0xff]
        %v299 = vld [vmem:[%s1 + $0x270] sm:$0xff]
        %v300 = vld [vmem:[%s1 + $0x278] sm:$0xff]
        %v301 = vld [vmem:[%s2] sm:$0x1f]
        %v303 = vlaneseq
        %v304 = vshrl.u32 %v303, 7
        %v305 = vsub.s32 0, %v304
        %v306 = vrot.slane %v301, %v305
        %v307 = vlaneseq
        %v308 = vshrl.u32 %v307, 7
        %v309 = vsub.s32 1, %v308
        %v310 = vrot.slane %v301, %v309
        %v311 = vlaneseq
        %v312 = vshrl.u32 %v311, 7
        %v313 = vsub.s32 2, %v312
        %v314 = vrot.slane %v301, %v313
        %v315 = vlaneseq
        %v316 = vshrl.u32 %v315, 7
        %v317 = vsub.s32 3, %v316
        %v318 = vrot.slane %v301, %v317
        %v319 = vlaneseq
        %v320 = vshrl.u32 %v319, 7
        %v321 = vsub.s32 4, %v320
        %v322 = vrot.slane %v301, %v321
        %328 = vmatprep.subr.mxu0 %v222
        %329 = vmatpush1.msra.mxu0 %v221
        %330 = vmatprep.subr.mxu0 %v227
        %331 = vmatpush1.msra.mxu0 %v226
        %332 = vmatprep.subr.mxu0 %v232
        %333 = vmatpush1.msra.mxu0 %v231
        %334 = vmatprep.subr.mxu0 %v237
        %335 = vmatpush1.msra.mxu0 %v236
        %336 = vmatprep.subr.mxu0 %v242
        %337 = vmatpush1.msra.mxu0 %v241
        %338 = vmatprep.subr.mxu0 %v247
        %339 = vmatpush1.msra.mxu0 %v246
        %340 = vmatprep.subr.mxu0 %v252
        %341 = vmatpush1.msra.mxu0 %v251
        %342 = vmatprep.subr.mxu0 %v257
        %343 = vmatpush1.msra.mxu0 %v256
        %344 = vmatprep.subr.mxu0 %v262
        %345 = vmatpush1.msra.mxu0 %v261
        %346 = vmatprep.subr.mxu0 %v267
        %347 = vmatpush1.msra.mxu0 %v266
        %348 = vmatprep.subr.mxu0 %v272
        %349 = vmatpush1.msra.mxu0 %v271
        %350 = vmatprep.subr.mxu0 %v277
        %351 = vmatpush1.msra.mxu0 %v276
        %352 = vmatprep.subr.mxu0 %v282
        %353 = vmatpush1.msra.mxu0 %v281
        %354 = vmatprep.subr.mxu0 %v287
        %355 = vmatpush1.msra.mxu0 %v286
        %356 = vmatprep.subr.mxu0 %v292
        %357 = vmatpush1.msra.mxu0 %v291
        %358 = vmatprep.subr.mxu0 %v297
        %359 = vmatpush1.msra.mxu0 %v296
        %360 = vmatprep.subr.mxu0 0.0
        %361 = vmatpush1.msra.mxu0 0.0
        %362 = vmatprep.subr.mxu0 0.0
        %363 = vmatpush1.msra.mxu0 0.0
        %364 = vmatprep.subr.mxu0 0.0
        %365 = vmatpush1.msra.mxu0 0.0
        %366 = vmatprep.subr.mxu0 0.0
        %367 = vmatpush1.msra.mxu0 0.0
        %368 = vmatprep.subr.mxu0 0.0
        %369 = vmatpush1.msra.mxu0 0.0
        %370 = vmatprep.subr.mxu0 0.0
        %371 = vmatpush1.msra.mxu0 0.0
        %372 = vmatprep.subr.mxu0 0.0
        %373 = vmatpush1.msra.mxu0 0.0
        %374 = vmatprep.subr.mxu0 0.0
        %375 = vmatpush1.msra.mxu0 0.0
        %376 = vmatprep.subr.mxu0 0.0
        %377 = vmatpush1.msra.mxu0 0.0
        %378 = vmatprep.subr.mxu0 0.0
        %379 = vmatpush1.msra.mxu0 0.0
        %380 = vmatprep.subr.mxu0 0.0
        %381 = vmatpush1.msra.mxu0 0.0
        %382 = vmatprep.subr.mxu0 0.0
        %383 = vmatpush1.msra.mxu0 0.0
        %384 = vmatprep.subr.mxu0 0.0
        %385 = vmatpush1.msra.mxu0 0.0
        %386 = vmatprep.subr.mxu0 0.0
        %387 = vmatpush1.msra.mxu0 0.0
        %388 = vmatprep.subr.mxu0 0.0
        %389 = vmatpush1.msra.mxu0 0.0
        %390 = vmatprep.subr.mxu0 0.0
        %391 = vmatpush1.msra.mxu0 0.0
        %392 = vmatprep.mubr.f32.mxu0 0.0
        %393 = vmatmul.mubr.f32.gmra.mrb[0].mxu0 %v220
        %v394 = vpop.f32.mrb[0].mxu0
        %v395 = vadd.f32 %v306, %v394
        %v396 = vpop.f32.mrb[0].mxu0
        %v397 = vadd.f32 %v310, %v396
        %398 = vdwg.mxu0
        %399 = vmatprep.subr.mxu0 %v224
        %400 = vmatpush1.msra.mxu0 %v223
        %401 = vmatprep.subr.mxu0 %v229
        %402 = vmatpush1.msra.mxu0 %v228
        %403 = vmatprep.subr.mxu0 %v234
        %404 = vmatpush1.msra.mxu0 %v233
        %405 = vmatprep.subr.mxu0 %v239
        %406 = vmatpush1.msra.mxu0 %v238
        %407 = vmatprep.subr.mxu0 %v244
        %408 = vmatpush1.msra.mxu0 %v243
        %409 = vmatprep.subr.mxu0 %v249
        %410 = vmatpush1.msra.mxu0 %v248
        %411 = vmatprep.subr.mxu0 %v254
        %412 = vmatpush1.msra.mxu0 %v253
        %413 = vmatprep.subr.mxu0 %v259
        %414 = vmatpush1.msra.mxu0 %v258
        %415 = vmatprep.subr.mxu0 %v264
        %416 = vmatpush1.msra.mxu0 %v263
        %417 = vmatprep.subr.mxu0 %v269
        %418 = vmatpush1.msra.mxu0 %v268
        %419 = vmatprep.subr.mxu0 %v274
        %420 = vmatpush1.msra.mxu0 %v273
        %421 = vmatprep.subr.mxu0 %v279
        %422 = vmatpush1.msra.mxu0 %v278
        %423 = vmatprep.subr.mxu0 %v284
        %424 = vmatpush1.msra.mxu0 %v283
        %425 = vmatprep.subr.mxu0 %v289
        %426 = vmatpush1.msra.mxu0 %v288
        %427 = vmatprep.subr.mxu0 %v294
        %428 = vmatpush1.msra.mxu0 %v293
        %429 = vmatprep.subr.mxu0 %v299
        %430 = vmatpush1.msra.mxu0 %v298
        %431 = vmatprep.subr.mxu0 0.0
        %432 = vmatpush1.msra.mxu0 0.0
        %433 = vmatprep.subr.mxu0 0.0
        %434 = vmatpush1.msra.mxu0 0.0
        %435 = vmatprep.subr.mxu0 0.0
        %436 = vmatpush1.msra.mxu0 0.0
        %437 = vmatprep.subr.mxu0 0.0
        %438 = vmatpush1.msra.mxu0 0.0
        %439 = vmatprep.subr.mxu0 0.0
        %440 = vmatpush1.msra.mxu0 0.0
        %441 = vmatprep.subr.mxu0 0.0
        %442 = vmatpush1.msra.mxu0 0.0
        %443 = vmatprep.subr.mxu0 0.0
        %444 = vmatpush1.msra.mxu0 0.0
        %445 = vmatprep.subr.mxu0 0.0
        %446 = vmatpush1.msra.mxu0 0.0
        %447 = vmatprep.subr.mxu0 0.0
        %448 = vmatpush1.msra.mxu0 0.0
        %449 = vmatprep.subr.mxu0 0.0
        %450 = vmatpush1.msra.mxu0 0.0
        %451 = vmatprep.subr.mxu0 0.0
        %452 = vmatpush1.msra.mxu0 0.0
        %453 = vmatprep.subr.mxu0 0.0
        %454 = vmatpush1.msra.mxu0 0.0
        %455 = vmatprep.subr.mxu0 0.0
        %456 = vmatpush1.msra.mxu0 0.0
        %457 = vmatprep.subr.mxu0 0.0
        %458 = vmatpush1.msra.mxu0 0.0
        %459 = vmatprep.subr.mxu0 0.0
        %460 = vmatpush1.msra.mxu0 0.0
        %461 = vmatprep.subr.mxu0 0.0
        %462 = vmatpush1.msra.mxu0 0.0
        %463 = vmatprep.mubr.f32.mxu0 0.0
        %464 = vmatmul.mubr.f32.gmra.mrb[0].mxu0 %v220
        %v465 = vpop.f32.mrb[0].mxu0
        %v466 = vadd.f32 %v314, %v465
        %v467 = vpop.f32.mrb[0].mxu0
        %v468 = vadd.f32 %v318, %v467
        %469 = vdwg.mxu0
        %470 = vmatprep.subr.mxu0 0.0
        %471 = vmatpush1.msra.mxu0 %v225
        %472 = vmatprep.subr.mxu0 0.0
        %473 = vmatpush1.msra.mxu0 %v230
        %474 = vmatprep.subr.mxu0 0.0
        %475 = vmatpush1.msra.mxu0 %v235
        %476 = vmatprep.subr.mxu0 0.0
        %477 = vmatpush1.msra.mxu0 %v240
        %478 = vmatprep.subr.mxu0 0.0
        %479 = vmatpush1.msra.mxu0 %v245
        %480 = vmatprep.subr.mxu0 0.0
        %481 = vmatpush1.msra.mxu0 %v250
        %482 = vmatprep.subr.mxu0 0.0
        %483 = vmatpush1.msra.mxu0 %v255
        %484 = vmatprep.subr.mxu0 0.0
        %485 = vmatpush1.msra.mxu0 %v260
        %486 = vmatprep.subr.mxu0 0.0
        %487 = vmatpush1.msra.mxu0 %v265
        %488 = vmatprep.subr.mxu0 0.0
        %489 = vmatpush1.msra.mxu0 %v270
        %490 = vmatprep.subr.mxu0 0.0
        %491 = vmatpush1.msra.mxu0 %v275
        %492 = vmatprep.subr.mxu0 0.0
        %493 = vmatpush1.msra.mxu0 %v280
        %494 = vmatprep.subr.mxu0 0.0
        %495 = vmatpush1.msra.mxu0 %v285
        %496 = vmatprep.subr.mxu0 0.0
        %497 = vmatpush1.msra.mxu0 %v290
        %498 = vmatprep.subr.mxu0 0.0
        %499 = vmatpush1.msra.mxu0 %v295
        %500 = vmatprep.subr.mxu0 0.0
        %501 = vmatpush1.msra.mxu0 %v300
        %502 = vmatprep.subr.mxu0 0.0
        %503 = vmatpush1.msra.mxu0 0.0
        %504 = vmatprep.subr.mxu0 0.0
        %505 = vmatpush1.msra.mxu0 0.0
        %506 = vmatprep.subr.mxu0 0.0
        %507 = vmatpush1.msra.mxu0 0.0
        %508 = vmatprep.subr.mxu0 0.0
        %509 = vmatpush1.msra.mxu0 0.0
        %510 = vmatprep.subr.mxu0 0.0
        %511 = vmatpush1.msra.mxu0 0.0
        %512 = vmatprep.subr.mxu0 0.0
        %513 = vmatpush1.msra.mxu0 0.0
        %514 = vmatprep.subr.mxu0 0.0
        %515 = vmatpush1.msra.mxu0 0.0
        %516 = vmatprep.subr.mxu0 0.0
        %517 = vmatpush1.msra.mxu0 0.0
        %518 = vmatprep.subr.mxu0 0.0
        %519 = vmatpush1.msra.mxu0 0.0
        %520 = vmatprep.subr.mxu0 0.0
        %521 = vmatpush1.msra.mxu0 0.0
        %522 = vmatprep.subr.mxu0 0.0
        %523 = vmatpush1.msra.mxu0 0.0
        %524 = vmatprep.subr.mxu0 0.0
        %525 = vmatpush1.msra.mxu0 0.0
        %526 = vmatprep.subr.mxu0 0.0
        %527 = vmatpush1.msra.mxu0 0.0
        %528 = vmatprep.subr.mxu0 0.0
        %529 = vmatpush1.msra.mxu0 0.0
        %530 = vmatprep.subr.mxu0 0.0
        %531 = vmatpush1.msra.mxu0 0.0
        %532 = vmatprep.subr.mxu0 0.0
        %533 = vmatpush1.msra.mxu0 0.0
        %534 = vmatprep.mubr.f32.mxu0 0.0
        %535 = vmatmul.mubr.f32.gmra.mrb[0].mxu0 %v220
        %v536 = vpop.f32.mrb[0].mxu0
        %v537 = vadd.f32 %v322, %v536
        %v538 = vpop.f32.mrb[0].mxu0
        %539 = vdwg.mxu0
        %v540 = vxor.u32 %v468, 2147483648
        %v541 = vmul.f32 %v540, 1.442695
        %v542 = vpow.pop %v541
        %v543 = vadd.f32 %v542, 1.0
        %v544 = vrcp.pop %v543
        %v545 = vmul.f32 1.0, %v544
        %v546 = vmul.f32 %v537, 1.442695
        %v547 = vpow.pop %v546
        %548 = vmatprep.subr.mxu0 0.0
        %549 = vmatpush1.xpose.msra.mxu0 %v397
        %550 = vmatprep.subr.mxu0 0.0
        %551 = vmatpush1.xpose.msra.mxu0 0.0
        %552 = vmatprep.subr.mxu0 0.0
        %553 = vmatpush1.xpose.msra.mxu0 0.0
        %554 = vmatprep.subr.mxu0 0.0
        %555 = vmatpush1.xpose.msra.mxu0 0.0
        %556 = vmatprep.subr.mxu0 0.0
        %557 = vmatpush1.xpose.msra.mxu0 0.0
        %558 = vmatprep.subr.mxu0 0.0
        %559 = vmatpush1.xpose.msra.mxu0 0.0
        %560 = vmatprep.subr.mxu0 0.0
        %561 = vmatpush1.xpose.msra.mxu0 0.0
        %562 = vmatprep.subr.mxu0 0.0
        %563 = vmatpush1.xpose.msra.mxu0 0.0
        %564 = vmatprep.subr.mxu0 0.0
        %565 = vmatpush1.xpose.msra.mxu0 0.0
        %566 = vmatprep.subr.mxu0 0.0
        %567 = vmatpush1.xpose.msra.mxu0 0.0
        %568 = vmatprep.subr.mxu0 0.0
        %569 = vmatpush1.xpose.msra.mxu0 0.0
        %570 = vmatprep.subr.mxu0 0.0
        %571 = vmatpush1.xpose.msra.mxu0 0.0
        %572 = vmatprep.subr.mxu0 0.0
        %573 = vmatpush1.xpose.msra.mxu0 0.0
        %574 = vmatprep.subr.mxu0 0.0
        %575 = vmatpush1.xpose.msra.mxu0 0.0
        %576 = vmatprep.subr.mxu0 0.0
        %577 = vmatpush1.xpose.msra.mxu0 0.0
        %578 = vmatprep.subr.mxu0 0.0
        %579 = vmatpush1.xpose.msra.mxu0 0.0
        %580 = vmatprep.subr.mxu0 0.0
        %581 = vmatpush1.xpose.msra.mxu0 0.0
        %582 = vmatprep.subr.mxu0 0.0
        %583 = vmatpush1.xpose.msra.mxu0 0.0
        %584 = vmatprep.subr.mxu0 0.0
        %585 = vmatpush1.xpose.msra.mxu0 0.0
        %586 = vmatprep.subr.mxu0 0.0
        %587 = vmatpush1.xpose.msra.mxu0 0.0
        %588 = vmatprep.subr.mxu0 0.0
        %589 = vmatpush1.xpose.msra.mxu0 0.0
        %590 = vmatprep.subr.mxu0 0.0
        %591 = vmatpush1.xpose.msra.mxu0 0.0
        %592 = vmatprep.subr.mxu0 0.0
        %593 = vmatpush1.xpose.msra.mxu0 0.0
        %594 = vmatprep.subr.mxu0 0.0
        %595 = vmatpush1.xpose.msra.mxu0 0.0
        %596 = vmatprep.subr.mxu0 0.0
        %597 = vmatpush1.xpose.msra.mxu0 0.0
        %598 = vmatprep.subr.mxu0 0.0
        %599 = vmatpush1.xpose.msra.mxu0 0.0
        %600 = vmatprep.subr.mxu0 0.0
        %601 = vmatpush1.xpose.msra.mxu0 0.0
        %602 = vmatprep.subr.mxu0 0.0
        %603 = vmatpush1.xpose.msra.mxu0 0.0
        %604 = vmatprep.subr.mxu0 0.0
        %605 = vmatpush1.xpose.msra.mxu0 0.0
        %606 = vmatprep.subr.mxu0 0.0
        %607 = vmatpush1.xpose.msra.mxu0 0.0
        %608 = vmatprep.subr.mxu0 0.0
        %609 = vmatpush1.xpose.msra.mxu0 0.0
        %610 = vmatprep.subr.mxu0 0.0
        %611 = vmatpush1.xpose.msra.mxu0 0.0
        %612 = vmatprep.mubr.f32.mxu0 0.0
        %613 = vmatmul.mubr.f32.gmra.mrb[0].mxu0 %v395
        %v614 = vpop.f32.mrb[0].mxu0
        %v615 = vadd.f32 0.0, %v614
        %v616 = vpop.f32.mrb[0].mxu0
        %617 = vdwg.mxu0
        %vm618 = vcmask 64512
        %v619 = vsel %vm618, %v615, -inf
        %620 = vmax.xlane.f32.xlu0 %v619
        %v621 = vpop.xlane.xlu0 %620
        %v622 = vsub.f32 %v615, %v621
        %v623 = vmul.f32 %v622, 1.442695
        %v624 = vpow.pop %v623
        %v625 = vsel %vm618, %v624, 0.0
        %626 = vadd.xlane.f32.xlu0 %v625
        %v627 = vpop.xlane.xlu0 %626
        %v628 = vrcp.pop %v627
        %v629 = vmul.f32 %v624, %v628
        %v631 = vsel %vm618, %v629, 0
        %633 = vmatprep.subr.mxu0 0.0
        %634 = vmatpush1.msra.mxu0 %v466
        %635 = vmatprep.subr.mxu0 0.0
        %636 = vmatpush1.msra.mxu0 0.0
        %637 = vmatprep.subr.mxu0 0.0
        %638 = vmatpush1.msra.mxu0 0.0
        %639 = vmatprep.subr.mxu0 0.0
        %640 = vmatpush1.msra.mxu0 0.0
        %641 = vmatprep.subr.mxu0 0.0
        %642 = vmatpush1.msra.mxu0 0.0
        %643 = vmatprep.subr.mxu0 0.0
        %644 = vmatpush1.msra.mxu0 0.0
        %645 = vmatprep.subr.mxu0 0.0
        %646 = vmatpush1.msra.mxu0 0.0
        %647 = vmatprep.subr.mxu0 0.0
        %648 = vmatpush1.msra.mxu0 0.0
        %649 = vmatprep.subr.mxu0 0.0
        %650 = vmatpush1.msra.mxu0 0.0
        %651 = vmatprep.subr.mxu0 0.0
        %652 = vmatpush1.msra.mxu0 0.0
        %653 = vmatprep.subr.mxu0 0.0
        %654 = vmatpush1.msra.mxu0 0.0
        %655 = vmatprep.subr.mxu0 0.0
        %656 = vmatpush1.msra.mxu0 0.0
        %657 = vmatprep.subr.mxu0 0.0
        %658 = vmatpush1.msra.mxu0 0.0
        %659 = vmatprep.subr.mxu0 0.0
        %660 = vmatpush1.msra.mxu0 0.0
        %661 = vmatprep.subr.mxu0 0.0
        %662 = vmatpush1.msra.mxu0 0.0
        %663 = vmatprep.subr.mxu0 0.0
        %664 = vmatpush1.msra.mxu0 0.0
        %665 = vmatprep.subr.mxu0 0.0
        %666 = vmatpush1.msra.mxu0 0.0
        %667 = vmatprep.subr.mxu0 0.0
        %668 = vmatpush1.msra.mxu0 0.0
        %669 = vmatprep.subr.mxu0 0.0
        %670 = vmatpush1.msra.mxu0 0.0
        %671 = vmatprep.subr.mxu0 0.0
        %672 = vmatpush1.msra.mxu0 0.0
        %673 = vmatprep.subr.mxu0 0.0
        %674 = vmatpush1.msra.mxu0 0.0
        %675 = vmatprep.subr.mxu0 0.0
        %676 = vmatpush1.msra.mxu0 0.0
        %677 = vmatprep.subr.mxu0 0.0
        %678 = vmatpush1.msra.mxu0 0.0
        %679 = vmatprep.subr.mxu0 0.0
        %680 = vmatpush1.msra.mxu0 0.0
        %681 = vmatprep.subr.mxu0 0.0
        %682 = vmatpush1.msra.mxu0 0.0
        %683 = vmatprep.subr.mxu0 0.0
        %684 = vmatpush1.msra.mxu0 0.0
        %685 = vmatprep.subr.mxu0 0.0
        %686 = vmatpush1.msra.mxu0 0.0
        %687 = vmatprep.subr.mxu0 0.0
        %688 = vmatpush1.msra.mxu0 0.0
        %689 = vmatprep.subr.mxu0 0.0
        %690 = vmatpush1.msra.mxu0 0.0
        %691 = vmatprep.subr.mxu0 0.0
        %692 = vmatpush1.msra.mxu0 0.0
        %693 = vmatprep.subr.mxu0 0.0
        %694 = vmatpush1.msra.mxu0 0.0
        %695 = vmatprep.subr.mxu0 0.0
        %696 = vmatpush1.msra.mxu0 0.0
        %697 = vmatprep.mubr.f32.mxu0 0.0
        %698 = vmatmul.mubr.f32.gmra.mrb[0].mxu0 %v631
        %v699 = vpop.f32.mrb[0].mxu0
        %v700 = vadd.f32 0.0, %v699
        %v701 = vpop.f32.mrb[0].mxu0
        %702 = vdwg.mxu0
        %v703 = vmul.f32 %v545, %v700
        %v704 = vmul.f32 %v547, %v466
        %v705 = vadd.f32 %v703, %v704
        %v706 = vadd.f32 %v545, %v547
        %v707 = vrcp.pop %v706
        %v708 = vmul.f32 %v705, %v707
        %v709 = vld [vmem:[%s3] sm:$0xff]
        %v710 = vld [vmem:[%s3 + $0x8] sm:$0xff]
        %v711 = vld [vmem:[%s3 + $0x10] sm:$0xff]
        %v712 = vld [vmem:[%s3 + $0x18] sm:$0xff]
        %v713 = vld [vmem:[%s3 + $0x20] sm:$0xff]
        %v714 = vld [vmem:[%s3 + $0x28] sm:$0xff]
        %v715 = vld [vmem:[%s3 + $0x30] sm:$0xff]
        %v716 = vld [vmem:[%s3 + $0x38] sm:$0xff]
        %v717 = vld [vmem:[%s3 + $0x40] sm:$0xff]
        %v718 = vld [vmem:[%s3 + $0x48] sm:$0xff]
        %v719 = vld [vmem:[%s3 + $0x50] sm:$0xff]
        %v720 = vld [vmem:[%s3 + $0x58] sm:$0xff]
        %v721 = vld [vmem:[%s3 + $0x60] sm:$0xff]
        %v722 = vld [vmem:[%s3 + $0x68] sm:$0xff]
        %v723 = vld [vmem:[%s3 + $0x70] sm:$0xff]
        %v724 = vld [vmem:[%s3 + $0x78] sm:$0xff]
        %v725 = vld [vmem:[%s4] sm:$0x1]
        %v727 = vlaneseq
        %v728 = vshrl.u32 %v727, 7
        %v729 = vsub.s32 0, %v728
        %v730 = vrot.slane %v725, %v729
        %732 = vmatprep.subr.mxu0 0.0
        %733 = vmatpush1.msra.mxu0 %v709
        %734 = vmatprep.subr.mxu0 0.0
        %735 = vmatpush1.msra.mxu0 %v710
        %736 = vmatprep.subr.mxu0 0.0
        %737 = vmatpush1.msra.mxu0 %v711
        %738 = vmatprep.subr.mxu0 0.0
        %739 = vmatpush1.msra.mxu0 %v712
        %740 = vmatprep.subr.mxu0 0.0
        %741 = vmatpush1.msra.mxu0 %v713
        %742 = vmatprep.subr.mxu0 0.0
        %743 = vmatpush1.msra.mxu0 %v714
        %744 = vmatprep.subr.mxu0 0.0
        %745 = vmatpush1.msra.mxu0 %v715
        %746 = vmatprep.subr.mxu0 0.0
        %747 = vmatpush1.msra.mxu0 %v716
        %748 = vmatprep.subr.mxu0 0.0
        %749 = vmatpush1.msra.mxu0 %v717
        %750 = vmatprep.subr.mxu0 0.0
        %751 = vmatpush1.msra.mxu0 %v718
        %752 = vmatprep.subr.mxu0 0.0
        %753 = vmatpush1.msra.mxu0 %v719
        %754 = vmatprep.subr.mxu0 0.0
        %755 = vmatpush1.msra.mxu0 %v720
        %756 = vmatprep.subr.mxu0 0.0
        %757 = vmatpush1.msra.mxu0 %v721
        %758 = vmatprep.subr.mxu0 0.0
        %759 = vmatpush1.msra.mxu0 %v722
        %760 = vmatprep.subr.mxu0 0.0
        %761 = vmatpush1.msra.mxu0 %v723
        %762 = vmatprep.subr.mxu0 0.0
        %763 = vmatpush1.msra.mxu0 %v724
        %764 = vmatprep.subr.mxu0 0.0
        %765 = vmatpush1.msra.mxu0 0.0
        %766 = vmatprep.subr.mxu0 0.0
        %767 = vmatpush1.msra.mxu0 0.0
        %768 = vmatprep.subr.mxu0 0.0
        %769 = vmatpush1.msra.mxu0 0.0
        %770 = vmatprep.subr.mxu0 0.0
        %771 = vmatpush1.msra.mxu0 0.0
        %772 = vmatprep.subr.mxu0 0.0
        %773 = vmatpush1.msra.mxu0 0.0
        %774 = vmatprep.subr.mxu0 0.0
        %775 = vmatpush1.msra.mxu0 0.0
        %776 = vmatprep.subr.mxu0 0.0
        %777 = vmatpush1.msra.mxu0 0.0
        %778 = vmatprep.subr.mxu0 0.0
        %779 = vmatpush1.msra.mxu0 0.0
        %780 = vmatprep.subr.mxu0 0.0
        %781 = vmatpush1.msra.mxu0 0.0
        %782 = vmatprep.subr.mxu0 0.0
        %783 = vmatpush1.msra.mxu0 0.0
        %784 = vmatprep.subr.mxu0 0.0
        %785 = vmatpush1.msra.mxu0 0.0
        %786 = vmatprep.subr.mxu0 0.0
        %787 = vmatpush1.msra.mxu0 0.0
        %788 = vmatprep.subr.mxu0 0.0
        %789 = vmatpush1.msra.mxu0 0.0
        %790 = vmatprep.subr.mxu0 0.0
        %791 = vmatpush1.msra.mxu0 0.0
        %792 = vmatprep.subr.mxu0 0.0
        %793 = vmatpush1.msra.mxu0 0.0
        %794 = vmatprep.subr.mxu0 0.0
        %795 = vmatpush1.msra.mxu0 0.0
        %796 = vmatprep.mubr.f32.mxu0 0.0
        %797 = vmatmul.mubr.f32.gmra.mrb[0].mxu0 %v708
        %v798 = vpop.f32.mrb[0].mxu0
        %v799 = vadd.f32 %v730, %v798
        %v800 = vpop.f32.mrb[0].mxu0
        %801 = vdwg.mxu0
        %802 = vst [vmem:[%s215] sm:$0xff] %v799
        %s803 = sand.u32 %s137, 1
        %s804 = scalar_lea.sflag [#allocation3], %s803
        %s805 = sand.u32 %s137, 1
        %s806 = smul.addr %s805, 8
        %s807 = scalar_lea.vmem [#allocation2], %s806
        // Predicated region
        $region41: #{mlstm_forward.1} parent=39 // pred_check
          %p808 = pneg %p147
        $region42: #{mlstm_forward.1} parent=39 // pred_check_branch
          %810 = sbr.rel (%p808) target = $region44
        $region43: #{mlstm_forward.1} parent=39 // pred_region
          %s812 = ssub.s32 128, 128
          %813 = vsyncadd %s804, %s812
          %s814 = smul.addr %s19, 128
          %s815 = scalar_lea.hbm %s5, %s814
          %s817 = sshll.u32 %s807, 4
          %s818 = int_to_ptr.vmem [resolvable:$true] %s817
          %820 = dma.vmem_to_hbm [thread:$0]  %s818, 128, %s815, %s804
        $region44: #{mlstm_forward.1} parent=39 // pred_fallthru
          _
      $region40: #{mlstm_forward.1} parent=5 // pred_fallthru
        _
      %p821 = scmp.le.s32.totalorder 2, %s14
      // Predicated region
      $region45: #{mlstm_forward.1} parent=5 // pred_check
        %p822 = pneg %p821
      $region46: #{mlstm_forward.1} parent=5 // pred_check_branch
        %824 = sbr.rel (%p822) target = $region48
      $region47: #{mlstm_forward.1} parent=5 // pred_region
        %s825 = ssub.s32 %s14, 2
        // Predicated region
        $region49: #{mlstm_forward.1} parent=47 // pred_check
          %p826 = pneg %p153
        $region50: #{mlstm_forward.1} parent=47 // pred_check_branch
          %828 = sbr.rel (%p826) target = $region52
        $region51: #{mlstm_forward.1} parent=47 // pred_region
          %s829 = sand.u32 %s138, 1
          %s830 = scalar_lea.sflag [#allocation3], %s829
          %s831 = sand.u32 %s138, 1
          %s832 = smul.addr %s831, 8
          %s833 = scalar_lea.vmem [#allocation2], %s832
          %834 = dma.done %s830, 128
        $region52: #{mlstm_forward.1} parent=47 // pred_fallthru
          _
      $region48: #{mlstm_forward.1} parent=5 // pred_fallthru
        _
    $region6: #{mlstm_forward.1} parent=1 // loop_footer
      %s18 = sadd.s32 1, %s14
    $region7: #{mlstm_forward.1} parent=1 // loop_footer_branch
      %13 = sbr.rel target = $region3
    $region8: #{mlstm_forward.1} parent=1 // loop_exit
      _
    %835 = vsyncpa [#allocation3], 1
    %s836 = scalar_lea.sflag [#allocation3], 1
    %837 = vsyncpa %s836, 1

// kernel: mlstm_forward.1
$region0: #{mlstm_forward.1}
  #allocation0 [shape = 'u32[]', space=smem, size = 0x4, offset = 0x4, fixed_abs, tag = 'smem constant byte address 0x4 - core index']
  #allocation1 [shape = 'u32[144,128]{1,0:T(1,128)}', space=vmem, size = 0x12000, scoped, tag = 'internal scratch']
  %s0 = inlined_call_operand.vmem [shape: f32[2,8,128], index: 0, kind: input, shape index: {}]
  %s1 = inlined_call_operand.vmem [shape: f32[128,640], index: 1, kind: input, shape index: {}]
  %s2 = inlined_call_operand.vmem [shape: f32[1,640], index: 2, kind: input, shape index: {}]
  %s3 = inlined_call_operand.vmem [shape: f32[128,128], index: 3, kind: input, shape index: {}]
  %s4 = inlined_call_operand.vmem [shape: f32[1,128], index: 4, kind: input, shape index: {}]
  %s5 = inlined_call_operand.hbm [shape: f32[2,8,128], index: 5, kind: output, shape index: {}]
  %s6 = sld [smem:[#allocation0]]
  $region53: #{mlstm_forward.1} parent=0
    _
  %s8 = ssub.s32 1, %s6
  %s9 = scalar_select 0, %s8, %s6
  $region1: #{mlstm_forward.1} parent=0
    #allocation2 [shape = 'u8[8192]{0}', space=vmem, size = 0x2000, scoped, tag = 'output window, operand 0']
    #allocation3 [shape = 's32[2]{0}', space=sflag, size = 0x8, scoped, tag = 'scoped memory for mlstm_forward.1']
    %10 = vsyncpa [#allocation3], 0
    %s11 = scalar_lea.sflag [#allocation3], 1
    %12 = vsyncpa %s11, 0
    loop: start=0, step=1, limit=4
    $region2: #{mlstm_forward.1} parent=1 // loop_pre_header
      _
    $region3: #{mlstm_forward.1} parent=1 // loop_header
      %s14 = sphi 0, %s18
      %p15 = scmp.ge.s32.totalorder %s14, 4
      %s24 = sphi 0, %s26
      %s27 = sphi 0, %s24
      %s28 = sphi 0, %s27
      %s44 = sphi 0, %s28
      %s48 = sphi 0, %s48
      %s50 = sphi 0, %s48
      %s51 = sphi 0, %s50
      %s65 = sphi 0, %s51
      %s69 = sphi 0, %s69
      %s71 = sphi 0, %s69
      %s72 = sphi 0, %s71
      %s86 = sphi 0, %s72
      %s90 = sphi 0, %s90
      %s92 = sphi 0, %s90
      %s93 = sphi 0, %s92
      %s107 = sphi 0, %s93
      %s111 = sphi 0, %s111
      %s113 = sphi 0, %s111
      %s114 = sphi 0, %s113
      %s128 = sphi 0, %s114
      %s134 = sphi 0, %s136
      %s137 = sphi 0, %s134
      %s138 = sphi 0, %s137
      %s154 = sphi 0, %s138
    $region4: #{mlstm_forward.1} parent=1 // loop_header_branch
      %17 = sbr.rel (%p15) target = $region8
    $region5: #{mlstm_forward.1} parent=1 // loop_body
      %s19 = ssub.s32 %s14, 1
      %s20 = ssub.s32 %s14, 2
      %s21 = sadd.s32 %s14, 1
      %s22 = ssub.s32 %s14, %s21
      %p23 = scmp.eq.s32.totalorder %s22, 0
      %s25 = sadd.s32 %s24, 1
      %s26 = scalar_select %p23, %s24, %s25
      %p29 = pneg %p23
      %p30 = scmp.eq.s32.totalorder %s14, 1
      %p31 = por %p29, %p30
      %p32 = scmp.ne.s32.totalorder %s24, %s27
      %p33 = scmp.eq.s32.totalorder %s14, 0
      %p34 = por %p32, %p33
      %p35 = scmp.ne.s32.totalorder %s24, %s27
      %p36 = scmp.eq.s32.totalorder %s19, 1
      %p37 = por %p35, %p36
      %p38 = scmp.ne.s32.totalorder %s27, %s28
      %p39 = scmp.eq.s32.totalorder %s19, 0
      %p40 = por %p38, %p39
      %p41 = scmp.ne.s32.totalorder %s27, %s28
      %p42 = scmp.eq.s32.totalorder %s20, 1
      %p43 = por %p41, %p42
      %p45 = scmp.ne.s32.totalorder %s28, %s44
      %p46 = scmp.eq.s32.totalorder %s20, 0
      %p47 = por %p45, %p46
      %s49 = sadd.s32 %s48, 1
      %p52 = scmp.eq.s32.totalorder %s14, 1
      %p53 = scmp.ne.s32.totalorder %s48, %s50
      %p54 = scmp.eq.s32.totalorder %s14, 0
      %p55 = por %p53, %p54
      %p56 = scmp.ne.s32.totalorder %s48, %s50
      %p57 = scmp.eq.s32.totalorder %s19, 1
      %p58 = por %p56, %p57
      %p59 = scmp.ne.s32.totalorder %s50, %s51
      %p60 = scmp.eq.s32.totalorder %s19, 0
      %p61 = por %p59, %p60
      %p62 = scmp.ne.s32.totalorder %s50, %s51
      %p63 = scmp.eq.s32.totalorder %s20, 1
      %p64 = por %p62, %p63
      %p66 = scmp.ne.s32.totalorder %s51, %s65
      %p67 = scmp.eq.s32.totalorder %s20, 0
      %p68 = por %p66, %p67
      %s70 = sadd.s32 %s69, 1
      %p73 = scmp.eq.s32.totalorder %s14, 1
      %p74 = scmp.ne.s32.totalorder %s69, %s71
      %p75 = scmp.eq.s32.totalorder %s14, 0
      %p76 = por %p74, %p75
      %p77 = scmp.ne.s32.totalorder %s69, %s71
      %p78 = scmp.eq.s32.totalorder %s19, 1
      %p79 = por %p77, %p78
      %p80 = scmp.ne.s32.totalorder %s71, %s72
      %p81 = scmp.eq.s32.totalorder %s19, 0
      %p82 = por %p80, %p81
      %p83 = scmp.ne.s32.totalorder %s71, %s72
      %p84 = scmp.eq.s32.totalorder %s20, 1
      %p85 = por %p83, %p84
      %p87 = scmp.ne.s32.totalorder %s72, %s86
      %p88 = scmp.eq.s32.totalorder %s20, 0
      %p89 = por %p87, %p88
      %s91 = sadd.s32 %s90, 1
      %p94 = scmp.eq.s32.totalorder %s14, 1
      %p95 = scmp.ne.s32.totalorder %s90, %s92
      %p96 = scmp.eq.s32.totalorder %s14, 0
      %p97 = por %p95, %p96
      %p98 = scmp.ne.s32.totalorder %s90, %s92
      %p99 = scmp.eq.s32.totalorder %s19, 1
      %p100 = por %p98, %p99
      %p101 = scmp.ne.s32.totalorder %s92, %s93
      %p102 = scmp.eq.s32.totalorder %s19, 0
      %p103 = por %p101, %p102
      %p104 = scmp.ne.s32.totalorder %s92, %s93
      %p105 = scmp.eq.s32.totalorder %s20, 1
      %p106 = por %p104, %p105
      %p108 = scmp.ne.s32.totalorder %s93, %s107
      %p109 = scmp.eq.s32.totalorder %s20, 0
      %p110 = por %p108, %p109
      %s112 = sadd.s32 %s111, 1
      %p115 = scmp.eq.s32.totalorder %s14, 1
      %p116 = scmp.ne.s32.totalorder %s111, %s113
      %p117 = scmp.eq.s32.totalorder %s14, 0
      %p118 = por %p116, %p117
      %p119 = scmp.ne.s32.totalorder %s111, %s113
      %p120 = scmp.eq.s32.totalorder %s19, 1
      %p121 = por %p119, %p120
      %p122 = scmp.ne.s32.totalorder %s113, %s114
      %p123 = scmp.eq.s32.totalorder %s19, 0
      %p124 = por %p122, %p123
      %p125 = scmp.ne.s32.totalorder %s113, %s114
      %p126 = scmp.eq.s32.totalorder %s20, 1
      %p127 = por %p125, %p126
      %p129 = scmp.ne.s32.totalorder %s114, %s128
      %p130 = scmp.eq.s32.totalorder %s20, 0
      %p131 = por %p129, %p130
      %s132 = ssub.s32 %s14, %s21
      %p133 = scmp.eq.s32.totalorder %s132, 0
      %s135 = sadd.s32 %s134, 1
      %s136 = scalar_select %p133, %s134, %s135
      %p139 = pneg %p133
      %p140 = scmp.eq.s32.totalorder %s14, 1
      %p141 = por %p139, %p140
      %p142 = scmp.ne.s32.totalorder %s134, %s137
      %p143 = scmp.eq.s32.totalorder %s14, 0
      %p144 = por %p142, %p143
      %p145 = scmp.ne.s32.totalorder %s134, %s137
      %p146 = scmp.eq.s32.totalorder %s19, 1
      %p147 = por %p145, %p146
      %p148 = scmp.ne.s32.totalorder %s137, %s138
      %p149 = scmp.eq.s32.totalorder %s19, 0
      %p150 = por %p148, %p149
      %p151 = scmp.ne.s32.totalorder %s137, %s138
      %p152 = scmp.eq.s32.totalorder %s20, 1
      %p153 = por %p151, %p152
      %p155 = scmp.ne.s32.totalorder %s138, %s154
      %p156 = scmp.eq.s32.totalorder %s20, 0
      %p157 = por %p155, %p156
      %p158 = scmp.le.s32.totalorder 1, %s14
      %p159 = scmp.lt.s32.totalorder %s14, 3
      %p160 = pnand %p158, %p159
      %p161 = pneg %p160
      // Predicated region
      $region9: #{mlstm_forward.1} parent=5 // pred_check
        _
      $region10: #{mlstm_forward.1} parent=5 // pred_check_branch
        %163 = sbr.rel (%p160) target = $region12
      $region11: #{mlstm_forward.1} parent=5 // pred_region
        %s164 = ssub.s32 %s14, 1
        // Predicated region
        $region13: #{mlstm_forward.1} parent=11 // pred_check
          %p165 = pneg %p61
        $region14: #{mlstm_forward.1} parent=11 // pred_check_branch
          %167 = sbr.rel (%p165) target = $region16
        $region15: #{mlstm_forward.1} parent=11 // pred_region
          _
        $region16: #{mlstm_forward.1} parent=11 // pred_fallthru
          _
        // Predicated region
        $region17: #{mlstm_forward.1} parent=11 // pred_check
          %p168 = pneg %p82
        $region18: #{mlstm_forward.1} parent=11 // pred_check_branch
          %170 = sbr.rel (%p168) target = $region20
        $region19: #{mlstm_forward.1} parent=11 // pred_region
          _
        $region20: #{mlstm_forward.1} parent=11 // pred_fallthru
          _
        // Predicated region
        $region21: #{mlstm_forward.1} parent=11 // pred_check
          %p171 = pneg %p103
        $region22: #{mlstm_forward.1} parent=11 // pred_check_branch
          %173 = sbr.rel (%p171) target = $region24
        $region23: #{mlstm_forward.1} parent=11 // pred_region
          _
        $region24: #{mlstm_forward.1} parent=11 // pred_fallthru
          _
        // Predicated region
        $region25: #{mlstm_forward.1} parent=11 // pred_check
          %p174 = pneg %p124
        $region26: #{mlstm_forward.1} parent=11 // pred_check_branch
          %176 = sbr.rel (%p174) target = $region28
        $region27: #{mlstm_forward.1} parent=11 // pred_region
          _
        $region28: #{mlstm_forward.1} parent=11 // pred_fallthru
          _
      $region12: #{mlstm_forward.1} parent=5 // pred_fallthru
        _
      %p177 = scmp.lt.s32.totalorder %s14, 2
      // Predicated region
      $region29: #{mlstm_forward.1} parent=5 // pred_check
        %p178 = pneg %p177
      $region30: #{mlstm_forward.1} parent=5 // pred_check_branch
        %180 = sbr.rel (%p178) target = $region32
      $region31: #{mlstm_forward.1} parent=5 // pred_region
        // Predicated region
        $region33: #{mlstm_forward.1} parent=31 // pred_check
          %p181 = pneg %p34
        $region34: #{mlstm_forward.1} parent=31 // pred_check_branch
          %183 = sbr.rel (%p181) target = $region36
        $region35: #{mlstm_forward.1} parent=31 // pred_region
          %p184 = scmp.lt.s32.totalorder %s14, 1
          %s185 = scalar_select %p184, %s14, 1
          %s186 = smul.addr %s185, 8
          %s187 = scalar_lea.vmem %s0, %s186
        $region36: #{mlstm_forward.1} parent=31 // pred_fallthru
          _
      $region32: #{mlstm_forward.1} parent=5 // pred_fallthru
        _
      %p188 = scmp.le.s32.totalorder 1, %s14
      %p189 = scmp.lt.s32.totalorder %s14, 3
      %p190 = pnand %p188, %p189
      %p191 = pneg %p190
      // Predicated region
      $region37: #{mlstm_forward.1} parent=5 // pred_check
        _
      $region38: #{mlstm_forward.1} parent=5 // pred_check_branch
        %193 = sbr.rel (%p190) target = $region40
      $region39: #{mlstm_forward.1} parent=5 // pred_region
        %s194 = ssub.s32 %s14, 1
        %p195 = scmp.lt.s32.totalorder %s19, 1
        %s196 = scalar_select %p195, %s19, 1
        %s197 = smul.addr %s196, 8
        %s198 = scalar_lea.vmem %s0, %s197
        %p199 = pneg %p40
        %p200 = pneg %p37
        %p201 = pneg %p61
        %p202 = pneg %p58
        %p203 = pneg %p82
        %p204 = pneg %p79
        %p205 = pneg %p103
        %p206 = pneg %p100
        %p207 = pneg %p124
        %p208 = pneg %p121
        %p209 = pneg %p150
        %p210 = pneg %p147
        %s211 = sand.u32 %s137, 1
        %s212 = scalar_lea.sflag [#allocation3], %s211
        %s213 = sand.u32 %s137, 1
        %s214 = smul.addr %s213, 8
        %s215 = scalar_lea.vmem [#allocation2], %s214
        %p216 = scmp.lt.s32.totalorder %s19, 1
        %s217 = scalar_select %p216, %s19, 1
        %s218 = smul.addr %s217, 8
        %s219 = scalar_lea.vmem %s0, %s218
        %v220 = vld [vmem:[%s219] sm:$0xff]
        %v221 = vld [vmem:[%s1] sm:$0xff]
        %v222 = vld [vmem:[%s1 + $0x8] sm:$0xff]
        %v223 = vld [vmem:[%s1 + $0x10] sm:$0xff]
        %v224 = vld [vmem:[%s1 + $0x18] sm:$0xff]
        %v225 = vld [vmem:[%s1 + $0x20] sm:$0xff]
        %v226 = vld [vmem:[%s1 + $0x28] sm:$0xff]
        %v227 = vld [vmem:[%s1 + $0x30] sm:$0xff]
        %v228 = vld [vmem:[%s1 + $0x38] sm:$0xff]
        %v229 = vld [vmem:[%s1 + $0x40] sm:$0xff]
        %v230 = vld [vmem:[%s1 + $0x48] sm:$0xff]
        %v231 = vld [vmem:[%s1 + $0x50] sm:$0xff]
        %v232 = vld [vmem:[%s1 + $0x58] sm:$0xff]
        %v233 = vld [vmem:[%s1 + $0x60] sm:$0xff]
        %v234 = vld [vmem:[%s1 + $0x68] sm:$0xff]
        %v235 = vld [vmem:[%s1 + $0x70] sm:$0xff]
        %v236 = vld [vmem:[%s1 + $0x78] sm:$0xff]
        %v237 = vld [vmem:[%s1 + $0x80] sm:$0xff]
        %v238 = vld [vmem:[%s1 + $0x88] sm:$0xff]
        %v239 = vld [vmem:[%s1 + $0x90] sm:$0xff]
        %v240 = vld [vmem:[%s1 + $0x98] sm:$0xff]
        %v241 = vld [vmem:[%s1 + $0xa0] sm:$0xff]
        %v242 = vld [vmem:[%s1 + $0xa8] sm:$0xff]
        %v243 = vld [vmem:[%s1 + $0xb0] sm:$0xff]
        %v244 = vld [vmem:[%s1 + $0xb8] sm:$0xff]
        %v245 = vld [vmem:[%s1 + $0xc0] sm:$0xff]
        %v246 = vld [vmem:[%s1 + $0xc8] sm:$0xff]
        %v247 = vld [vmem:[%s1 + $0xd0] sm:$0xff]
        %v248 = vld [vmem:[%s1 + $0xd8] sm:$0xff]
        %v249 = vld [vmem:[%s1 + $0xe0] sm:$0xff]
        %v250 = vld [vmem:[%s1 + $0xe8] sm:$0xff]
        %v251 = vld [vmem:[%s1 + $0xf0] sm:$0xff]
        %v252 = vld [vmem:[%s1 + $0xf8] sm:$0xff]
        %v253 = vld [vmem:[%s1 + $0x100] sm:$0xff]
        %v254 = vld [vmem:[%s1 + $0x108] sm:$0xff]
        %v255 = vld [vmem:[%s1 + $0x110] sm:$0xff]
        %v256 = vld [vmem:[%s1 + $0x118] sm:$0xff]
        %v257 = vld [vmem:[%s1 + $0x120] sm:$0xff]
        %v258 = vld [vmem:[%s1 + $0x128] sm:$0xff]
        %v259 = vld [vmem:[%s1 + $0x130] sm:$0xff]
        %v260 = vld [vmem:[%s1 + $0x138] sm:$0xff]
        %v261 = vld [vmem:[%s1 + $0x140] sm:$0xff]
        %v262 = vld [vmem:[%s1 + $0x148] sm:$0xff]
        %v263 = vld [vmem:[%s1 + $0x150] sm:$0xff]
        %v264 = vld [vmem:[%s1 + $0x158] sm:$0xff]
        %v265 = vld [vmem:[%s1 + $0x160] sm:$0xff]
        %v266 = vld [vmem:[%s1 + $0x168] sm:$0xff]
        %v267 = vld [vmem:[%s1 + $0x170] sm:$0xff]
        %v268 = vld [vmem:[%s1 + $0x178] sm:$0xff]
        %v269 = vld [vmem:[%s1 + $0x180] sm:$0xff]
        %v270 = vld [vmem:[%s1 + $0x188] sm:$0xff]
        %v271 = vld [vmem:[%s1 + $0x190] sm:$0xff]
        %v272 = vld [vmem:[%s1 + $0x198] sm:$0xff]
        %v273 = vld [vmem:[%s1 + $0x1a0] sm:$0xff]
        %v274 = vld [vmem:[%s1 + $0x1a8] sm:$0xff]
        %v275 = vld [vmem:[%s1 + $0x1b0] sm:$0xff]
        %v276 = vld [vmem:[%s1 + $0x1b8] sm:$0xff]
        %v277 = vld [vmem:[%s1 + $0x1c0] sm:$0xff]
        %v278 = vld [vmem:[%s1 + $0x1c8] sm:$0xff]
        %v279 = vld [vmem:[%s1 + $0x1d0] sm:$0xff]
        %v280 = vld [vmem:[%s1 + $0x1d8] sm:$0xff]
        %v281 = vld [vmem:[%s1 + $0x1e0] sm:$0xff]
        %v282 = vld [vmem:[%s1 + $0x1e8] sm:$0xff]
        %v283 = vld [vmem:[%s1 + $0x1f0] sm:$0xff]
        %v284 = vld [vmem:[%s1 + $0x1f8] sm:$0xff]
        %v285 = vld [vmem:[%s1 + $0x200] sm:$0xff]
        %v286 = vld [vmem:[%s1 + $0x208] sm:$0xff]
        %v287 = vld [vmem:[%s1 + $0x210] sm:$0xff]
        %v288 = vld [vmem:[%s1 + $0x218] sm:$0xff]
        %v289 = vld [vmem:[%s1 + $0x220] sm:$0xff]
        %v290 = vld [vmem:[%s1 + $0x228] sm:$0xff]
        %v291 = vld [vmem:[%s1 + $0x230] sm:$0xff]
        %v292 = vld [vmem:[%s1 + $0x238] sm:$0xff]
        %v293 = vld [vmem:[%s1 + $0x240] sm:$0xff]
        %v294 = vld [vmem:[%s1 + $0x248] sm:$0xff]
        %v295 = vld [vmem:[%s1 + $0x250] sm:$0xff]
        %v296 = vld [vmem:[%s1 + $0x258] sm:$0xff]
        %v297 = vld [vmem:[%s1 + $0x260] sm:$0xff]
        %v298 = vld [vmem:[%s1 + $0x268] sm:$0xff]
        %v299 = vld [vmem:[%s1 + $0x270] sm:$0xff]
        %v300 = vld [vmem:[%s1 + $0x278] sm:$0xff]
        %v301 = vld [vmem:[%s2] sm:$0x1f]
        %v303 = vlaneseq
        %v304 = vshrl.u32 %v303, 7
        %v305 = vsub.s32 0, %v304
        %v306 = vrot.slane %v301, %v305
        %v307 = vlaneseq
        %v308 = vshrl.u32 %v307, 7
        %v309 = vsub.s32 1, %v308
        %v310 = vrot.slane %v301, %v309
        %v311 = vlaneseq
        %v312 = vshrl.u32 %v311, 7
        %v313 = vsub.s32 2, %v312
        %v314 = vrot.slane %v301, %v313
        %v315 = vlaneseq
        %v316 = vshrl.u32 %v315, 7
        %v317 = vsub.s32 3, %v316
        %v318 = vrot.slane %v301, %v317
        %v319 = vlaneseq
        %v320 = vshrl.u32 %v319, 7
        %v321 = vsub.s32 4, %v320
        %v322 = vrot.slane %v301, %v321
        %328 = vmatprep.subr.mxu0 %v222
        %329 = vmatpush1.msra.mxu0 %v221
        %330 = vmatprep.subr.mxu0 %v227
        %331 = vmatpush1.msra.mxu0 %v226
        %332 = vmatprep.subr.mxu0 %v232
        %333 = vmatpush1.msra.mxu0 %v231
        %334 = vmatprep.subr.mxu0 %v237
        %335 = vmatpush1.msra.mxu0 %v236
        %336 = vmatprep.subr.mxu0 %v242
        %337 = vmatpush1.msra.mxu0 %v241
        %338 = vmatprep.subr.mxu0 %v247
        %339 = vmatpush1.msra.mxu0 %v246
        %340 = vmatprep.subr.mxu0 %v252
        %341 = vmatpush1.msra.mxu0 %v251
        %342 = vmatprep.subr.mxu0 %v257
        %343 = vmatpush1.msra.mxu0 %v256
        %344 = vmatprep.subr.mxu0 %v262
        %345 = vmatpush1.msra.mxu0 %v261
        %346 = vmatprep.subr.mxu0 %v267
        %347 = vmatpush1.msra.mxu0 %v266
        %348 = vmatprep.subr.mxu0 %v272
        %349 = vmatpush1.msra.mxu0 %v271
        %350 = vmatprep.subr.mxu0 %v277
        %351 = vmatpush1.msra.mxu0 %v276
        %352 = vmatprep.subr.mxu0 %v282
        %353 = vmatpush1.msra.mxu0 %v281
        %354 = vmatprep.subr.mxu0 %v287
        %355 = vmatpush1.msra.mxu0 %v286
        %356 = vmatprep.subr.mxu0 %v292
        %357 = vmatpush1.msra.mxu0 %v291
        %358 = vmatprep.subr.mxu0 %v297
        %359 = vmatpush1.msra.mxu0 %v296
        %360 = vmatprep.subr.mxu0 0.0
        %361 = vmatpush1.msra.mxu0 0.0
        %362 = vmatprep.subr.mxu0 0.0
        %363 = vmatpush1.msra.mxu0 0.0
        %364 = vmatprep.subr.mxu0 0.0
        %365 = vmatpush1.msra.mxu0 0.0
        %366 = vmatprep.subr.mxu0 0.0
        %367 = vmatpush1.msra.mxu0 0.0
        %368 = vmatprep.subr.mxu0 0.0
        %369 = vmatpush1.msra.mxu0 0.0
        %370 = vmatprep.subr.mxu0 0.0
        %371 = vmatpush1.msra.mxu0 0.0
        %372 = vmatprep.subr.mxu0 0.0
        %373 = vmatpush1.msra.mxu0 0.0
        %374 = vmatprep.subr.mxu0 0.0
        %375 = vmatpush1.msra.mxu0 0.0
        %376 = vmatprep.subr.mxu0 0.0
        %377 = vmatpush1.msra.mxu0 0.0
        %378 = vmatprep.subr.mxu0 0.0
        %379 = vmatpush1.msra.mxu0 0.0
        %380 = vmatprep.subr.mxu0 0.0
        %381 = vmatpush1.msra.mxu0 0.0
        %382 = vmatprep.subr.mxu0 0.0
        %383 = vmatpush1.msra.mxu0 0.0
        %384 = vmatprep.subr.mxu0 0.0
        %385 = vmatpush1.msra.mxu0 0.0
        %386 = vmatprep.subr.mxu0 0.0
        %387 = vmatpush1.msra.mxu0 0.0
        %388 = vmatprep.subr.mxu0 0.0
        %389 = vmatpush1.msra.mxu0 0.0
        %390 = vmatprep.subr.mxu0 0.0
        %391 = vmatpush1.msra.mxu0 0.0
        %392 = vmatprep.mubr.f32.mxu0 0.0
        %393 = vmatmul.mubr.f32.gmra.mrb[0].mxu0 %v220
        %v394 = vpop.f32.mrb[0].mxu0
        %v395 = vadd.f32 %v306, %v394
        %v396 = vpop.f32.mrb[0].mxu0
        %v397 = vadd.f32 %v310, %v396
        %398 = vdwg.mxu0
        %399 = vmatprep.subr.mxu0 %v224
        %400 = vmatpush1.msra.mxu0 %v223
        %401 = vmatprep.subr.mxu0 %v229
        %402 = vmatpush1.msra.mxu0 %v228
        %403 = vmatprep.subr.mxu0 %v234
        %404 = vmatpush1.msra.mxu0 %v233
        %405 = vmatprep.subr.mxu0 %v239
        %406 = vmatpush1.msra.mxu0 %v238
        %407 = vmatprep.subr.mxu0 %v244
        %408 = vmatpush1.msra.mxu0 %v243
        %409 = vmatprep.subr.mxu0 %v249
        %410 = vmatpush1.msra.mxu0 %v248
        %411 = vmatprep.subr.mxu0 %v254
        %412 = vmatpush1.msra.mxu0 %v253
        %413 = vmatprep.subr.mxu0 %v259
        %414 = vmatpush1.msra.mxu0 %v258
        %415 = vmatprep.subr.mxu0 %v264
        %416 = vmatpush1.msra.mxu0 %v263
        %417 = vmatprep.subr.mxu0 %v269
        %418 = vmatpush1.msra.mxu0 %v268
        %419 = vmatprep.subr.mxu0 %v274
        %420 = vmatpush1.msra.mxu0 %v273
        %421 = vmatprep.subr.mxu0 %v279
        %422 = vmatpush1.msra.mxu0 %v278
        %423 = vmatprep.subr.mxu0 %v284
        %424 = vmatpush1.msra.mxu0 %v283
        %425 = vmatprep.subr.mxu0 %v289
        %426 = vmatpush1.msra.mxu0 %v288
        %427 = vmatprep.subr.mxu0 %v294
        %428 = vmatpush1.msra.mxu0 %v293
        %429 = vmatprep.subr.mxu0 %v299
        %430 = vmatpush1.msra.mxu0 %v298
        %431 = vmatprep.subr.mxu0 0.0
        %432 = vmatpush1.msra.mxu0 0.0
        %433 = vmatprep.subr.mxu0 0.0
        %434 = vmatpush1.msra.mxu0 0.0
        %435 = vmatprep.subr.mxu0 0.0
        %436 = vmatpush1.msra.mxu0 0.0
        %437 = vmatprep.subr.mxu0 0.0
        %438 = vmatpush1.msra.mxu0 0.0
        %439 = vmatprep.subr.mxu0 0.0
        %440 = vmatpush1.msra.mxu0 0.0
        %441 = vmatprep.subr.mxu0 0.0
        %442 = vmatpush1.msra.mxu0 0.0
        %443 = vmatprep.subr.mxu0 0.0
        %444 = vmatpush1.msra.mxu0 0.0
        %445 = vmatprep.subr.mxu0 0.0
        %446 = vmatpush1.msra.mxu0 0.0
        %447 = vmatprep.subr.mxu0 0.0
        %448 = vmatpush1.msra.mxu0 0.0
        %449 = vmatprep.subr.mxu0 0.0
        %450 = vmatpush1.msra.mxu0 0.0
        %451 = vmatprep.subr.mxu0 0.0
        %452 = vmatpush1.msra.mxu0 0.0
        %453 = vmatprep.subr.mxu0 0.0
        %454 = vmatpush1.msra.mxu0 0.0
        %455 = vmatprep.subr.mxu0 0.0
        %456 = vmatpush1.msra.mxu0 0.0
        %457 = vmatprep.subr.mxu0 0.0
        %458 = vmatpush1.msra.mxu0 0.0
        %459 = vmatprep.subr.mxu0 0.0
        %460 = vmatpush1.msra.mxu0 0.0
        %461 = vmatprep.subr.mxu0 0.0
        %462 = vmatpush1.msra.mxu0 0.0
        %463 = vmatprep.mubr.f32.mxu0 0.0
        %464 = vmatmul.mubr.f32.gmra.mrb[0].mxu0 %v220
        %v465 = vpop.f32.mrb[0].mxu0
        %v466 = vadd.f32 %v314, %v465
        %v467 = vpop.f32.mrb[0].mxu0
        %v468 = vadd.f32 %v318, %v467
        %469 = vdwg.mxu0
        %470 = vmatprep.subr.mxu0 0.0
        %471 = vmatpush1.msra.mxu0 %v225
        %472 = vmatprep.subr.mxu0 0.0
        %473 = vmatpush1.msra.mxu0 %v230
        %474 = vmatprep.subr.mxu0 0.0
        %475 = vmatpush1.msra.mxu0 %v235
        %476 = vmatprep.subr.mxu0 0.0
        %477 = vmatpush1.msra.mxu0 %v240
        %478 = vmatprep.subr.mxu0 0.0
        %479 = vmatpush1.msra.mxu0 %v245
        %480 = vmatprep.subr.mxu0 0.0
        %481 = vmatpush1.msra.mxu0 %v250
        %482 = vmatprep.subr.mxu0 0.0
        %483 = vmatpush1.msra.mxu0 %v255
        %484 = vmatprep.subr.mxu0 0.0
        %485 = vmatpush1.msra.mxu0 %v260
        %486 = vmatprep.subr.mxu0 0.0
        %487 = vmatpush1.msra.mxu0 %v265
        %488 = vmatprep.subr.mxu0 0.0
        %489 = vmatpush1.msra.mxu0 %v270
        %490 = vmatprep.subr.mxu0 0.0
        %491 = vmatpush1.msra.mxu0 %v275
        %492 = vmatprep.subr.mxu0 0.0
        %493 = vmatpush1.msra.mxu0 %v280
        %494 = vmatprep.subr.mxu0 0.0
        %495 = vmatpush1.msra.mxu0 %v285
        %496 = vmatprep.subr.mxu0 0.0
        %497 = vmatpush1.msra.mxu0 %v290
        %498 = vmatprep.subr.mxu0 0.0
        %499 = vmatpush1.msra.mxu0 %v295
        %500 = vmatprep.subr.mxu0 0.0
        %501 = vmatpush1.msra.mxu0 %v300
        %502 = vmatprep.subr.mxu0 0.0
        %503 = vmatpush1.msra.mxu0 0.0
        %504 = vmatprep.subr.mxu0 0.0
        %505 = vmatpush1.msra.mxu0 0.0
        %506 = vmatprep.subr.mxu0 0.0
        %507 = vmatpush1.msra.mxu0 0.0
        %508 = vmatprep.subr.mxu0 0.0
        %509 = vmatpush1.msra.mxu0 0.0
        %510 = vmatprep.subr.mxu0 0.0
        %511 = vmatpush1.msra.mxu0 0.0
        %512 = vmatprep.subr.mxu0 0.0
        %513 = vmatpush1.msra.mxu0 0.0
        %514 = vmatprep.subr.mxu0 0.0
        %515 = vmatpush1.msra.mxu0 0.0
        %516 = vmatprep.subr.mxu0 0.0
        %517 = vmatpush1.msra.mxu0 0.0
        %518 = vmatprep.subr.mxu0 0.0
        %519 = vmatpush1.msra.mxu0 0.0
        %520 = vmatprep.subr.mxu0 0.0
        %521 = vmatpush1.msra.mxu0 0.0
        %522 = vmatprep.subr.mxu0 0.0
        %523 = vmatpush1.msra.mxu0 0.0
        %524 = vmatprep.subr.mxu0 0.0
        %525 = vmatpush1.msra.mxu0 0.0
        %526 = vmatprep.subr.mxu0 0.0
        %527 = vmatpush1.msra.mxu0 0.0
        %528 = vmatprep.subr.mxu0 0.0
        %529 = vmatpush1.msra.mxu0 0.0
        %530 = vmatprep.subr.mxu0 0.0
        %531 = vmatpush1.msra.mxu0 0.0
        %532 = vmatprep.subr.mxu0 0.0
        %533 = vmatpush1.msra.mxu0 0.0
        %534 = vmatprep.mubr.f32.mxu0 0.0
        %535 = vmatmul.mubr.f32.gmra.mrb[0].mxu0 %v220
        %v536 = vpop.f32.mrb[0].mxu0
        %v537 = vadd.f32 %v322, %v536
        %v538 = vpop.f32.mrb[0].mxu0
        %539 = vdwg.mxu0
        %v540 = vxor.u32 %v468, 2147483648
        %v541 = vmul.f32 %v540, 1.442695
        %v542 = vpow.pop %v541
        %v543 = vadd.f32 %v542, 1.0
        %v544 = vrcp.pop %v543
        %v545 = vmul.f32 1.0, %v544
        %v546 = vmul.f32 %v537, 1.442695
        %v547 = vpow.pop %v546
        %548 = vmatprep.subr.mxu0 0.0
        %549 = vmatpush1.xpose.msra.mxu0 %v397
        %550 = vmatprep.subr.mxu0 0.0
        %551 = vmatpush1.xpose.msra.mxu0 0.0
        %552 = vmatprep.subr.mxu0 0.0
        %553 = vmatpush1.xpose.msra.mxu0 0.0
        %554 = vmatprep.subr.mxu0 0.0
        %555 = vmatpush1.xpose.msra.mxu0 0.0
        %556 = vmatprep.subr.mxu0 0.0
        %557 = vmatpush1.xpose.msra.mxu0 0.0
        %558 = vmatprep.subr.mxu0 0.0
        %559 = vmatpush1.xpose.msra.mxu0 0.0
        %560 = vmatprep.subr.mxu0 0.0
        %561 = vmatpush1.xpose.msra.mxu0 0.0
        %562 = vmatprep.subr.mxu0 0.0
        %563 = vmatpush1.xpose.msra.mxu0 0.0
        %564 = vmatprep.subr.mxu0 0.0
        %565 = vmatpush1.xpose.msra.mxu0 0.0
        %566 = vmatprep.subr.mxu0 0.0
        %567 = vmatpush1.xpose.msra.mxu0 0.0
        %568 = vmatprep.subr.mxu0 0.0
        %569 = vmatpush1.xpose.msra.mxu0 0.0
        %570 = vmatprep.subr.mxu0 0.0
        %571 = vmatpush1.xpose.msra.mxu0 0.0
        %572 = vmatprep.subr.mxu0 0.0
        %573 = vmatpush1.xpose.msra.mxu0 0.0
        %574 = vmatprep.subr.mxu0 0.0
        %575 = vmatpush1.xpose.msra.mxu0 0.0
        %576 = vmatprep.subr.mxu0 0.0
        %577 = vmatpush1.xpose.msra.mxu0 0.0
        %578 = vmatprep.subr.mxu0 0.0
        %579 = vmatpush1.xpose.msra.mxu0 0.0
        %580 = vmatprep.subr.mxu0 0.0
        %581 = vmatpush1.xpose.msra.mxu0 0.0
        %582 = vmatprep.subr.mxu0 0.0
        %583 = vmatpush1.xpose.msra.mxu0 0.0
        %584 = vmatprep.subr.mxu0 0.0
        %585 = vmatpush1.xpose.msra.mxu0 0.0
        %586 = vmatprep.subr.mxu0 0.0
        %587 = vmatpush1.xpose.msra.mxu0 0.0
        %588 = vmatprep.subr.mxu0 0.0
        %589 = vmatpush1.xpose.msra.mxu0 0.0
        %590 = vmatprep.subr.mxu0 0.0
        %591 = vmatpush1.xpose.msra.mxu0 0.0
        %592 = vmatprep.subr.mxu0 0.0
        %593 = vmatpush1.xpose.msra.mxu0 0.0
        %594 = vmatprep.subr.mxu0 0.0
        %595 = vmatpush1.xpose.msra.mxu0 0.0
        %596 = vmatprep.subr.mxu0 0.0
        %597 = vmatpush1.xpose.msra.mxu0 0.0
        %598 = vmatprep.subr.mxu0 0.0
        %599 = vmatpush1.xpose.msra.mxu0 0.0
        %600 = vmatprep.subr.mxu0 0.0
        %601 = vmatpush1.xpose.msra.mxu0 0.0
        %602 = vmatprep.subr.mxu0 0.0
        %603 = vmatpush1.xpose.msra.mxu0 0.0
        %604 = vmatprep.subr.mxu0 0.0
        %605 = vmatpush1.xpose.msra.mxu0 0.0
        %606 = vmatprep.subr.mxu0 0.0
        %607 = vmatpush1.xpose.msra.mxu0 0.0
        %608 = vmatprep.subr.mxu0 0.0
        %609 = vmatpush1.xpose.msra.mxu0 0.0
        %610 = vmatprep.subr.mxu0 0.0
        %611 = vmatpush1.xpose.msra.mxu0 0.0
        %612 = vmatprep.mubr.f32.mxu0 0.0
        %613 = vmatmul.mubr.f32.gmra.mrb[0].mxu0 %v395
        %v614 = vpop.f32.mrb[0].mxu0
        %v615 = vadd.f32 0.0, %v614
        %v616 = vpop.f32.mrb[0].mxu0
        %617 = vdwg.mxu0
        %vm618 = vcmask 64512
        %v619 = vsel %vm618, %v615, -inf
        %620 = vmax.xlane.f32.xlu0 %v619
        %v621 = vpop.xlane.xlu0 %620
        %v622 = vsub.f32 %v615, %v621
        %v623 = vmul.f32 %v622, 1.442695
        %v624 = vpow.pop %v623
        %v625 = vsel %vm618, %v624, 0.0
        %626 = vadd.xlane.f32.xlu0 %v625
        %v627 = vpop.xlane.xlu0 %626
        %v628 = vrcp.pop %v627
        %v629 = vmul.f32 %v624, %v628
        %v631 = vsel %vm618, %v629, 0
        %633 = vmatprep.subr.mxu0 0.0
        %634 = vmatpush1.msra.mxu0 %v466
        %635 = vmatprep.subr.mxu0 0.0
        %636 = vmatpush1.msra.mxu0 0.0
        %637 = vmatprep.subr.mxu0 0.0
        %638 = vmatpush1.msra.mxu0 0.0
        %639 = vmatprep.subr.mxu0 0.0
        %640 = vmatpush1.msra.mxu0 0.0
        %641 = vmatprep.subr.mxu0 0.0
        %642 = vmatpush1.msra.mxu0 0.0
        %643 = vmatprep.subr.mxu0 0.0
        %644 = vmatpush1.msra.mxu0 0.0
        %645 = vmatprep.subr.mxu0 0.0
        %646 = vmatpush1.msra.mxu0 0.0
        %647 = vmatprep.subr.mxu0 0.0
        %648 = vmatpush1.msra.mxu0 0.0
        %649 = vmatprep.subr.mxu0 0.0
        %650 = vmatpush1.msra.mxu0 0.0
        %651 = vmatprep.subr.mxu0 0.0
        %652 = vmatpush1.msra.mxu0 0.0
        %653 = vmatprep.subr.mxu0 0.0
        %654 = vmatpush1.msra.mxu0 0.0
        %655 = vmatprep.subr.mxu0 0.0
        %656 = vmatpush1.msra.mxu0 0.0
        %657 = vmatprep.subr.mxu0 0.0
        %658 = vmatpush1.msra.mxu0 0.0
        %659 = vmatprep.subr.mxu0 0.0
        %660 = vmatpush1.msra.mxu0 0.0
        %661 = vmatprep.subr.mxu0 0.0
        %662 = vmatpush1.msra.mxu0 0.0
        %663 = vmatprep.subr.mxu0 0.0
        %664 = vmatpush1.msra.mxu0 0.0
        %665 = vmatprep.subr.mxu0 0.0
        %666 = vmatpush1.msra.mxu0 0.0
        %667 = vmatprep.subr.mxu0 0.0
        %668 = vmatpush1.msra.mxu0 0.0
        %669 = vmatprep.subr.mxu0 0.0
        %670 = vmatpush1.msra.mxu0 0.0
        %671 = vmatprep.subr.mxu0 0.0
        %672 = vmatpush1.msra.mxu0 0.0
        %673 = vmatprep.subr.mxu0 0.0
        %674 = vmatpush1.msra.mxu0 0.0
        %675 = vmatprep.subr.mxu0 0.0
        %676 = vmatpush1.msra.mxu0 0.0
        %677 = vmatprep.subr.mxu0 0.0
        %678 = vmatpush1.msra.mxu0 0.0
        %679 = vmatprep.subr.mxu0 0.0
        %680 = vmatpush1.msra.mxu0 0.0
        %681 = vmatprep.subr.mxu0 0.0
        %682 = vmatpush1.msra.mxu0 0.0
        %683 = vmatprep.subr.mxu0 0.0
        %684 = vmatpush1.msra.mxu0 0.0
        %685 = vmatprep.subr.mxu0 0.0
        %686 = vmatpush1.msra.mxu0 0.0
        %687 = vmatprep.subr.mxu0 0.0
        %688 = vmatpush1.msra.mxu0 0.0
        %689 = vmatprep.subr.mxu0 0.0
        %690 = vmatpush1.msra.mxu0 0.0
        %691 = vmatprep.subr.mxu0 0.0
        %692 = vmatpush1.msra.mxu0 0.0
        %693 = vmatprep.subr.mxu0 0.0
        %694 = vmatpush1.msra.mxu0 0.0
        %695 = vmatprep.subr.mxu0 0.0
        %696 = vmatpush1.msra.mxu0 0.0
        %697 = vmatprep.mubr.f32.mxu0 0.0
        %698 = vmatmul.mubr.f32.gmra.mrb[0].mxu0 %v631
        %v699 = vpop.f32.mrb[0].mxu0
        %v700 = vadd.f32 0.0, %v699
        %v701 = vpop.f32.mrb[0].mxu0
        %702 = vdwg.mxu0
        %v703 = vmul.f32 %v545, %v700
        %v704 = vmul.f32 %v547, %v466
        %v705 = vadd.f32 %v703, %v704
        %v706 = vadd.f32 %v545, %v547
        %v707 = vrcp.pop %v706
        %v708 = vmul.f32 %v705, %v707
        %v709 = vld [vmem:[%s3] sm:$0xff]
        %v710 = vld [vmem:[%s3 + $0x8] sm:$0xff]
        %v711 = vld [vmem:[%s3 + $0x10] sm:$0xff]
        %v712 = vld [vmem:[%s3 + $0x18] sm:$0xff]
        %v713 = vld [vmem:[%s3 + $0x20] sm:$0xff]
        %v714 = vld [vmem:[%s3 + $0x28] sm:$0xff]
        %v715 = vld [vmem:[%s3 + $0x30] sm:$0xff]
        %v716 = vld [vmem:[%s3 + $0x38] sm:$0xff]
        %v717 = vld [vmem:[%s3 + $0x40] sm:$0xff]
        %v718 = vld [vmem:[%s3 + $0x48] sm:$0xff]
        %v719 = vld [vmem:[%s3 + $0x50] sm:$0xff]
        %v720 = vld [vmem:[%s3 + $0x58] sm:$0xff]
        %v721 = vld [vmem:[%s3 + $0x60] sm:$0xff]
        %v722 = vld [vmem:[%s3 + $0x68] sm:$0xff]
        %v723 = vld [vmem:[%s3 + $0x70] sm:$0xff]
        %v724 = vld [vmem:[%s3 + $0x78] sm:$0xff]
        %v725 = vld [vmem:[%s4] sm:$0x1]
        %v727 = vlaneseq
        %v728 = vshrl.u32 %v727, 7
        %v729 = vsub.s32 0, %v728
        %v730 = vrot.slane %v725, %v729
        %732 = vmatprep.subr.mxu0 0.0
        %733 = vmatpush1.msra.mxu0 %v709
        %734 = vmatprep.subr.mxu0 0.0
        %735 = vmatpush1.msra.mxu0 %v710
        %736 = vmatprep.subr.mxu0 0.0
        %737 = vmatpush1.msra.mxu0 %v711
        %738 = vmatprep.subr.mxu0 0.0
        %739 = vmatpush1.msra.mxu0 %v712
        %740 = vmatprep.subr.mxu0 0.0
        %741 = vmatpush1.msra.mxu0 %v713
        %742 = vmatprep.subr.mxu0 0.0
        %743 = vmatpush1.msra.mxu0 %v714
        %744 = vmatprep.subr.mxu0 0.0
        %745 = vmatpush1.msra.mxu0 %v715
        %746 = vmatprep.subr.mxu0 0.0
        %747 = vmatpush1.msra.mxu0 %v716
        %748 = vmatprep.subr.mxu0 0.0
        %749 = vmatpush1.msra.mxu0 %v717
        %750 = vmatprep.subr.mxu0 0.0
        %751 = vmatpush1.msra.mxu0 %v718
        %752 = vmatprep.subr.mxu0 0.0
        %753 = vmatpush1.msra.mxu0 %v719
        %754 = vmatprep.subr.mxu0 0.0
        %755 = vmatpush1.msra.mxu0 %v720
        %756 = vmatprep.subr.mxu0 0.0
        %757 = vmatpush1.msra.mxu0 %v721
        %758 = vmatprep.subr.mxu0 0.0
        %759 = vmatpush1.msra.mxu0 %v722
        %760 = vmatprep.subr.mxu0 0.0
        %761 = vmatpush1.msra.mxu0 %v723
        %762 = vmatprep.subr.mxu0 0.0
        %763 = vmatpush1.msra.mxu0 %v724
        %764 = vmatprep.subr.mxu0 0.0
        %765 = vmatpush1.msra.mxu0 0.0
        %766 = vmatprep.subr.mxu0 0.0
        %767 = vmatpush1.msra.mxu0 0.0
        %768 = vmatprep.subr.mxu0 0.0
        %769 = vmatpush1.msra.mxu0 0.0
        %770 = vmatprep.subr.mxu0 0.0
        %771 = vmatpush1.msra.mxu0 0.0
        %772 = vmatprep.subr.mxu0 0.0
        %773 = vmatpush1.msra.mxu0 0.0
        %774 = vmatprep.subr.mxu0 0.0
        %775 = vmatpush1.msra.mxu0 0.0
        %776 = vmatprep.subr.mxu0 0.0
        %777 = vmatpush1.msra.mxu0 0.0
        %778 = vmatprep.subr.mxu0 0.0
        %779 = vmatpush1.msra.mxu0 0.0
        %780 = vmatprep.subr.mxu0 0.0
        %781 = vmatpush1.msra.mxu0 0.0
        %782 = vmatprep.subr.mxu0 0.0
        %783 = vmatpush1.msra.mxu0 0.0
        %784 = vmatprep.subr.mxu0 0.0
        %785 = vmatpush1.msra.mxu0 0.0
        %786 = vmatprep.subr.mxu0 0.0
        %787 = vmatpush1.msra.mxu0 0.0
        %788 = vmatprep.subr.mxu0 0.0
        %789 = vmatpush1.msra.mxu0 0.0
        %790 = vmatprep.subr.mxu0 0.0
        %791 = vmatpush1.msra.mxu0 0.0
        %792 = vmatprep.subr.mxu0 0.0
        %793 = vmatpush1.msra.mxu0 0.0
        %794 = vmatprep.subr.mxu0 0.0
        %795 = vmatpush1.msra.mxu0 0.0
        %796 = vmatprep.mubr.f32.mxu0 0.0
        %797 = vmatmul.mubr.f32.gmra.mrb[0].mxu0 %v708
        %v798 = vpop.f32.mrb[0].mxu0
        %v799 = vadd.f32 %v730, %v798
        %v800 = vpop.f32.mrb[0].mxu0
        %801 = vdwg.mxu0
        %802 = vst [vmem:[%s215] sm:$0xff] %v799
        %s803 = sand.u32 %s137, 1
        %s804 = scalar_lea.sflag [#allocation3], %s803
        %s805 = sand.u32 %s137, 1
        %s806 = smul.addr %s805, 8
        %s807 = scalar_lea.vmem [#allocation2], %s806
        // Predicated region
        $region41: #{mlstm_forward.1} parent=39 // pred_check
          %p808 = pneg %p147
        $region42: #{mlstm_forward.1} parent=39 // pred_check_branch
          %810 = sbr.rel (%p808) target = $region44
        $region43: #{mlstm_forward.1} parent=39 // pred_region
          %s812 = ssub.s32 128, 128
          %813 = vsyncadd %s804, %s812
          %s814 = smul.addr %s19, 128
          %s815 = scalar_lea.hbm %s5, %s814
          %s817 = sshll.u32 %s807, 4
          %s818 = int_to_ptr.vmem [resolvable:$true] %s817
          %820 = dma.vmem_to_hbm [thread:$0]  %s818, 128, %s815, %s804
        $region44: #{mlstm_forward.1} parent=39 // pred_fallthru
          _
      $region40: #{mlstm_forward.1} parent=5 // pred_fallthru
        _
      %p821 = scmp.le.s32.totalorder 2, %s14
      // Predicated region
      $region45: #{mlstm_forward.1} parent=5 // pred_check
        %p822 = pneg %p821
      $region46: #{mlstm_forward.1} parent=5 // pred_check_branch
        %824 = sbr.rel (%p822) target = $region48
      $region47: #{mlstm_forward.1} parent=5 // pred_region
        %s825 = ssub.s32 %s14, 2
        // Predicated region
        $region49: #{mlstm_forward.1} parent=47 // pred_check
          %p826 = pneg %p153
        $region50: #{mlstm_forward.1} parent=47 // pred_check_branch
          %828 = sbr.rel (%p826) target = $region52
        $region51: #{mlstm_forward.1} parent=47 // pred_region
          %s829 = sand.u32 %s138, 1
          %s830 = scalar_lea.sflag [#allocation3], %s829
          %s831 = sand.u32 %s138, 1
          %s832 = smul.addr %s831, 8
          %s833 = scalar_lea.vmem [#allocation2], %s832
          %834 = dma.done %s830, 128
        $region52: #{mlstm_forward.1} parent=47 // pred_fallthru
          _
      $region48: #{mlstm_forward.1} parent=5 // pred_fallthru
        _
    $region6: #{mlstm_forward.1} parent=1 // loop_footer
      %s18 = sadd.s32 1, %s14
    $region7: #{mlstm_forward.1} parent=1 // loop_footer_branch
      %13 = sbr.rel target = $region3
    $region8: #{mlstm_forward.1} parent=1 // loop_exit
      _
    %835 = vsyncpa [#allocation3], 1
    %s836 = scalar_lea.sflag [#allocation3], 1
    %837 = vsyncpa %s836, 1

</llo_original>
